<compile_context>
chip_gen: v5e
topology: v5e:2x2
jax: 0.10.0
libtpu: 0.0.40
codegen_flags: <defaults>
</compile_context>

<pallas_src>
import functools

import jax
import jax.numpy as jnp
from jax.experimental import pallas as pl
from jax.experimental.pallas import tpu as pltpu


# Padded (lane-aligned) layer widths.
D_IN = 784          # input features (full-array block, no padding needed)
H1_P, H2_P, H3_P, C_P = 384, 256, 128, 128   # 300, 200, 100, 10 padded to lanes
NEG_BIG = -1e30     # "minus infinity" for padded class logits


def _round_up(n, m):
    return (n + m - 1) // m * m


# ----------------------------- Pallas kernel --------------------------------

def _mlp_kernel(x_ref,
                w1_ref, b1_ref,
                w2_ref, b2_ref,
                w3_ref, b3_ref,
                w4_ref, b4_ref,
                o_ref):
    """Full MLP hot path: 4 matmuls + bias + ReLU + log_softmax, all in VMEM.

    Weights arrive in the compute dtype (bf16 by default); accumulation and all
    elementwise math are f32. Biases are f32.
    """
    cdt = w1_ref.dtype
    x = x_ref[...]                                              # (TB, 784) cdt

    h = jnp.dot(x, w1_ref[...], preferred_element_type=jnp.float32) + b1_ref[...]
    h = jnp.maximum(h, 0.0)                                     # ReLU (dropout = id)

    h = jnp.dot(h.astype(cdt), w2_ref[...],
                preferred_element_type=jnp.float32) + b2_ref[...]
    h = jnp.maximum(h, 0.0)

    h = jnp.dot(h.astype(cdt), w3_ref[...],
                preferred_element_type=jnp.float32) + b3_ref[...]
    h = jnp.maximum(h, 0.0)

    logits = jnp.dot(h.astype(cdt), w4_ref[...],
                     preferred_element_type=jnp.float32) + b4_ref[...]
    # padded class lanes carry a -1e30 bias -> exp() underflows to exactly 0,
    # so the max / logsumexp below only see the 10 real classes.

    m = jnp.max(logits, axis=-1, keepdims=True)
    shifted = logits - m
    lse = jnp.log(jnp.sum(jnp.exp(shifted), axis=-1, keepdims=True))
    o_ref[...] = (shifted - lse).astype(o_ref.dtype)            # (TB, 128) f32


# ------------------------------- Wrapper -------------------------------------

@functools.partial(jax.jit, static_argnames=("batch_tile", "use_bf16"))
def neuro_network_forward(x, params, *, batch_tile=256, use_bf16=True):
    """x: (B, 1, 28, 28) or (B, 784) float32.  Returns (B, 10) log-probs."""
    B = x.shape[0]
    x2d = x.reshape(B, -1).astype(jnp.float32)                  # x.view(B, -1)
    assert x2d.shape[1] == D_IN, f"expected {D_IN} features, got {x2d.shape[1]}"

    compute_dtype = jnp.bfloat16 if use_bf16 else jnp.float32

    # ---- batch tiling: pad B up to a multiple of the (sublane-friendly) tile.
    tile = min(batch_tile, _round_up(B, 16))     # tiny batches -> single step
    B_pad = _round_up(B, tile)
    if B_pad != B:
        x2d = jnp.pad(x2d, ((0, B_pad - B), (0, 0)))
    x_in = x2d.astype(compute_dtype)

    # ---- lane-pad parameters (zero rows/cols are mathematically exact;
    #      padded output classes get a -1e30 bias so softmax ignores them).
    (w1, b1), (w2, b2), (w3, b3), (w4, b4) = params

    def pad_wb(w, b, in_p, out_p, bias_fill=0.0):
        fi, fo = w.shape
        w_p = jnp.pad(w.astype(jnp.float32), ((0, in_p - fi), (0, out_p - fo)))
        b_p = jnp.pad(b.reshape(1, -1).astype(jnp.float32),
                      ((0, 0), (0, out_p - fo)), constant_values=bias_fill)
        return w_p.astype(compute_dtype), b_p                  # biases stay f32

    w1p, b1p = pad_wb(w1, b1, D_IN, H1_P)
    w2p, b2p = pad_wb(w2, b2, H1_P, H2_P)
    w3p, b3p = pad_wb(w3, b3, H2_P, H3_P)
    w4p, b4p = pad_wb(w4, b4, H3_P, C_P, bias_fill=NEG_BIG)

    grid = (B_pad // tile,)

    def row_block(feat):
        # activation block: tile the batch axis, keep full feature axis
        return pl.BlockSpec((tile, feat), lambda i: (i, 0))

    def full_block(arr):
        # parameter block: whole array, resident across every grid step
        return pl.BlockSpec(arr.shape, lambda i: (0, 0))

    itemsize = jnp.dtype(compute_dtype).itemsize
    weight_elems = (D_IN * H1_P + H1_P * H2_P + H2_P * H3_P + H3_P * C_P)
    bias_elems = H1_P + H2_P + H3_P + C_P
    cost = pl.CostEstimate(
        flops=2 * B_pad * weight_elems,
        transcendentals=B_pad * C_P,                    # exp() in log_softmax
        bytes_accessed=(x_in.size * itemsize
                        + weight_elems * itemsize
                        + bias_elems * 4
                        + B_pad * C_P * 4),
    )

    out = pl.pallas_call(
        _mlp_kernel,
        out_shape=jax.ShapeDtypeStruct((B_pad, C_P), jnp.float32),
        grid_spec=pltpu.PrefetchScalarGridSpec(
            num_scalar_prefetch=0,
            grid=grid,
            in_specs=[
                row_block(D_IN),
                full_block(w1p), full_block(b1p),
                full_block(w2p), full_block(b2p),
                full_block(w3p), full_block(b3p),
                full_block(w4p), full_block(b4p),
            ],
            out_specs=row_block(C_P),                   # lane-dense (128) store
        ),
        compiler_params=pltpu.CompilerParams(
            dimension_semantics=("parallel",),          # batch tiles independent
        ),
        cost_estimate=cost,
    )(x_in, w1p, b1p, w2p, b2p, w3p, b3p, w4p, b4p)

    return out[:B, :10]                                 # drop batch/class padding


# --------------------------- Parameter creation ------------------------------

def init_params(key):
    """Deterministic init matching nn.Linear shapes; weights stored (in, out)
    so y = x @ W + b matches PyTorch's F.linear(x, W_t) with W_t = W.T."""
    dims = [(784, 300), (300, 200), (200, 100), (100, 10)]
    params = []
    for (fan_in, fan_out) in dims:
        key, kw, kb = jax.random.split(key, 3)
        bound = 1.0 / jnp.sqrt(fan_in)          # PyTorch nn.Linear default range
        w = jax.random.uniform(kw, (fan_in, fan_out), jnp.float32, -bound, bound)
        b = jax.random.uniform(kb, (fan_out,), jnp.float32, -bound, bound)
        params.append((w, b))
    return params


def reference_forward(x, params, use_bf16=True):
    """Plain-JAX reference mirroring the kernel's dtype strategy
    (bf16 matmul inputs, f32 accumulation / elementwise)."""
    cdt = jnp.bfloat16 if use_bf16 else jnp.float32
    h = x.reshape(x.shape[0], -1).astype(jnp.float32)
    for i, (w, b) in enumerate(params):
        h = jnp.dot(h.astype(cdt), w.astype(cdt),
                    preferred_element_type=jnp.float32)
        h = h + b.reshape(1, -1).astype(jnp.float32)
        if i < 3:
            h = jnp.maximum(h, 0.0)
    return jax.nn.log_softmax(h, axis=1)


# --------------------------------- Main ---------------------------------------

if __name__ == "__main__":
    key = jax.random.PRNGKey(0)
    kx, kp = jax.random.split(key)

    # MNIST-like input: batch=8, NCHW (8, 1, 28, 28) -> flattened to 784 inside
    x = jax.random.normal(kx, (8, 1, 28, 28), dtype=jnp.float32)
    params = init_params(kp)

    out = neuro_network_forward(x, params)
    out = jax.block_until_ready(out)

    ref = reference_forward(x, params, use_bf16=True)
    assert out.shape == (8, 10), out.shape
    assert bool(jnp.allclose(out, ref, atol=2e-3, rtol=2e-3)), "mismatch vs reference"

    print("KERNEL_OK")
</pallas_src>

<mosaic_0001>
module attributes {stable_mosaic.version = 11 : i64} {
  func.func @_mlp_kernel(%arg0: i32, %arg1: memref<16x784xbf16, #tpu.memory_space<vmem>>, %arg2: memref<784x384xbf16, #tpu.memory_space<vmem>>, %arg3: memref<1x384xf32, #tpu.memory_space<vmem>>, %arg4: memref<384x256xbf16, #tpu.memory_space<vmem>>, %arg5: memref<1x256xf32, #tpu.memory_space<vmem>>, %arg6: memref<256x128xbf16, #tpu.memory_space<vmem>>, %arg7: memref<1x128xf32, #tpu.memory_space<vmem>>, %arg8: memref<128x128xbf16, #tpu.memory_space<vmem>>, %arg9: memref<1x128xf32, #tpu.memory_space<vmem>>, %arg10: memref<16x128xf32, #tpu.memory_space<vmem>>) attributes {dimension_semantics = [#tpu.dimension_semantics<parallel>], iteration_bounds = array<i64: 1>, scalar_prefetch = 0 : i64, scratch_operands = 0 : i64, tpu.core_type = #tpu.core_type<tc>, window_params = [{transform_indices = @transform_0, window_bounds = array<i64: 16, 784>}, {pipeline_mode = #tpu.pipeline_mode<synchronous>, transform_indices = @transform_1, window_bounds = array<i64: 784, 384>}, {pipeline_mode = #tpu.pipeline_mode<synchronous>, transform_indices = @transform_2, window_bounds = array<i64: 1, 384>}, {pipeline_mode = #tpu.pipeline_mode<synchronous>, transform_indices = @transform_3, window_bounds = array<i64: 384, 256>}, {pipeline_mode = #tpu.pipeline_mode<synchronous>, transform_indices = @transform_4, window_bounds = array<i64: 1, 256>}, {pipeline_mode = #tpu.pipeline_mode<synchronous>, transform_indices = @transform_5, window_bounds = array<i64: 256, 128>}, {pipeline_mode = #tpu.pipeline_mode<synchronous>, transform_indices = @transform_6, window_bounds = array<i64: 1, 128>}, {pipeline_mode = #tpu.pipeline_mode<synchronous>, transform_indices = @transform_7, window_bounds = array<i64: 128, 128>}, {pipeline_mode = #tpu.pipeline_mode<synchronous>, transform_indices = @transform_8, window_bounds = array<i64: 1, 128>}, {transform_indices = @transform_9, window_bounds = array<i64: 16, 128>}]} {
    %c0 = arith.constant 0 : index
    %c0_0 = arith.constant 0 : index
    %0 = vector.load %arg1[%c0, %c0_0] : memref<16x784xbf16, #tpu.memory_space<vmem>>, vector<16x784xbf16>
    %c0_1 = arith.constant 0 : index
    %c0_2 = arith.constant 0 : index
    %1 = vector.load %arg2[%c0_1, %c0_2] : memref<784x384xbf16, #tpu.memory_space<vmem>>, vector<784x384xbf16>
    %cst = arith.constant dense<0.000000e+00> : vector<16x384xf32>
    %2 = tpu.matmul %0, %1, %cst {dimension_numbers = #tpu.dot_dimension_numbers<[1], [0], [0], [1], [0, 0, 1, 1], [], []>} : vector<16x784xbf16>, vector<784x384xbf16>, vector<16x384xf32> -> vector<16x384xf32>
    %c0_3 = arith.constant 0 : index
    %c0_4 = arith.constant 0 : index
    %3 = vector.load %arg3[%c0_3, %c0_4] : memref<1x384xf32, #tpu.memory_space<vmem>>, vector<1x384xf32>
    %4 = vector.broadcast %3 : vector<1x384xf32> to vector<16x384xf32>
    %5 = arith.addf %2, %4 : vector<16x384xf32>
    %cst_5 = arith.constant 0.000000e+00 : f32
    %6 = vector.broadcast %cst_5 : f32 to vector<16x384xf32>
    %7 = arith.maximumf %5, %6 : vector<16x384xf32>
    %8 = arith.truncf %7 : vector<16x384xf32> to vector<16x384xbf16>
    %c0_6 = arith.constant 0 : index
    %c0_7 = arith.constant 0 : index
    %9 = vector.load %arg4[%c0_6, %c0_7] : memref<384x256xbf16, #tpu.memory_space<vmem>>, vector<384x256xbf16>
    %cst_8 = arith.constant dense<0.000000e+00> : vector<16x256xf32>
    %10 = tpu.matmul %8, %9, %cst_8 {dimension_numbers = #tpu.dot_dimension_numbers<[1], [0], [0], [1], [0, 0, 1, 1], [], []>} : vector<16x384xbf16>, vector<384x256xbf16>, vector<16x256xf32> -> vector<16x256xf32>
    %c0_9 = arith.constant 0 : index
    %c0_10 = arith.constant 0 : index
    %11 = vector.load %arg5[%c0_9, %c0_10] : memref<1x256xf32, #tpu.memory_space<vmem>>, vector<1x256xf32>
    %12 = vector.broadcast %11 : vector<1x256xf32> to vector<16x256xf32>
    %13 = arith.addf %10, %12 : vector<16x256xf32>
    %cst_11 = arith.constant 0.000000e+00 : f32
    %14 = vector.broadcast %cst_11 : f32 to vector<16x256xf32>
    %15 = arith.maximumf %13, %14 : vector<16x256xf32>
    %16 = arith.truncf %15 : vector<16x256xf32> to vector<16x256xbf16>
    %c0_12 = arith.constant 0 : index
    %c0_13 = arith.constant 0 : index
    %17 = vector.load %arg6[%c0_12, %c0_13] : memref<256x128xbf16, #tpu.memory_space<vmem>>, vector<256x128xbf16>
    %cst_14 = arith.constant dense<0.000000e+00> : vector<16x128xf32>
    %18 = tpu.matmul %16, %17, %cst_14 {dimension_numbers = #tpu.dot_dimension_numbers<[1], [0], [0], [1], [0, 0, 1, 1], [], []>} : vector<16x256xbf16>, vector<256x128xbf16>, vector<16x128xf32> -> vector<16x128xf32>
    %c0_15 = arith.constant 0 : index
    %c0_16 = arith.constant 0 : index
    %19 = vector.load %arg7[%c0_15, %c0_16] : memref<1x128xf32, #tpu.memory_space<vmem>>, vector<1x128xf32>
    %20 = vector.broadcast %19 : vector<1x128xf32> to vector<16x128xf32>
    %21 = arith.addf %18, %20 : vector<16x128xf32>
    %cst_17 = arith.constant 0.000000e+00 : f32
    %22 = vector.broadcast %cst_17 : f32 to vector<16x128xf32>
    %23 = arith.maximumf %21, %22 : vector<16x128xf32>
    %24 = arith.truncf %23 : vector<16x128xf32> to vector<16x128xbf16>
    %c0_18 = arith.constant 0 : index
    %c0_19 = arith.constant 0 : index
    %25 = vector.load %arg8[%c0_18, %c0_19] : memref<128x128xbf16, #tpu.memory_space<vmem>>, vector<128x128xbf16>
    %cst_20 = arith.constant dense<0.000000e+00> : vector<16x128xf32>
    %26 = tpu.matmul %24, %25, %cst_20 {dimension_numbers = #tpu.dot_dimension_numbers<[1], [0], [0], [1], [0, 0, 1, 1], [], []>} : vector<16x128xbf16>, vector<128x128xbf16>, vector<16x128xf32> -> vector<16x128xf32>
    %c0_21 = arith.constant 0 : index
    %c0_22 = arith.constant 0 : index
    %27 = vector.load %arg9[%c0_21, %c0_22] : memref<1x128xf32, #tpu.memory_space<vmem>>, vector<1x128xf32>
    %28 = vector.broadcast %27 : vector<1x128xf32> to vector<16x128xf32>
    %29 = arith.addf %26, %28 : vector<16x128xf32>
    %cst_23 = arith.constant dense<0xFF800000> : vector<16xf32>
    %30 = vector.multi_reduction <maximumf>, %29, %cst_23 [1] : vector<16x128xf32> to vector<16xf32>
    %31 = vector.shape_cast %30 : vector<16xf32> to vector<16x1xf32>
    %32 = vector.broadcast %31 : vector<16x1xf32> to vector<16x128xf32>
    %33 = arith.subf %29, %32 : vector<16x128xf32>
    %34 = math.exp %33 : vector<16x128xf32>
    %cst_24 = arith.constant dense<0.000000e+00> : vector<16xf32>
    %35 = vector.multi_reduction <add>, %34, %cst_24 [1] : vector<16x128xf32> to vector<16xf32>
    %36 = vector.shape_cast %35 : vector<16xf32> to vector<16x1xf32>
    %37 = math.log %36 : vector<16x1xf32>
    %38 = vector.broadcast %37 : vector<16x1xf32> to vector<16x128xf32>
    %39 = arith.subf %33, %38 : vector<16x128xf32>
    %c0_25 = arith.constant 0 : index
    %c0_26 = arith.constant 0 : index
    %40 = vector.load %arg10[%c0_25, %c0_26] : memref<16x128xf32, #tpu.memory_space<vmem>>, vector<16x128xf32>
    tpu.vector_store %arg10[%c0_25, %c0_26], %39 {strides = array<i32>} : memref<16x128xf32, #tpu.memory_space<vmem>>, vector<16x128xf32>,
    return
  }
  func.func @transform_0(%arg0: i32) -> (i32, i32) {
    %c0_i32 = arith.constant 0 : i32
    %c0_i32_0 = arith.constant 0 : i32
    return %arg0, %c0_i32 : i32, i32
  }
  func.func @transform_1(%arg0: i32) -> (i32, i32) {
    %c0_i32 = arith.constant 0 : i32
    %c0_i32_0 = arith.constant 0 : i32
    %c0_i32_1 = arith.constant 0 : i32
    return %c0_i32, %c0_i32_0 : i32, i32
  }
  func.func @transform_2(%arg0: i32) -> (i32, i32) {
    %c0_i32 = arith.constant 0 : i32
    %c0_i32_0 = arith.constant 0 : i32
    %c0_i32_1 = arith.constant 0 : i32
    return %c0_i32, %c0_i32_0 : i32, i32
  }
  func.func @transform_3(%arg0: i32) -> (i32, i32) {
    %c0_i32 = arith.constant 0 : i32
    %c0_i32_0 = arith.constant 0 : i32
    %c0_i32_1 = arith.constant 0 : i32
    return %c0_i32, %c0_i32_0 : i32, i32
  }
  func.func @transform_4(%arg0: i32) -> (i32, i32) {
    %c0_i32 = arith.constant 0 : i32
    %c0_i32_0 = arith.constant 0 : i32
    %c0_i32_1 = arith.constant 0 : i32
    return %c0_i32, %c0_i32_0 : i32, i32
  }
  func.func @transform_5(%arg0: i32) -> (i32, i32) {
    %c0_i32 = arith.constant 0 : i32
    %c0_i32_0 = arith.constant 0 : i32
    %c0_i32_1 = arith.constant 0 : i32
    return %c0_i32, %c0_i32_0 : i32, i32
  }
  func.func @transform_6(%arg0: i32) -> (i32, i32) {
    %c0_i32 = arith.constant 0 : i32
    %c0_i32_0 = arith.constant 0 : i32
    %c0_i32_1 = arith.constant 0 : i32
    return %c0_i32, %c0_i32_0 : i32, i32
  }
  func.func @transform_7(%arg0: i32) -> (i32, i32) {
    %c0_i32 = arith.constant 0 : i32
    %c0_i32_0 = arith.constant 0 : i32
    %c0_i32_1 = arith.constant 0 : i32
    return %c0_i32, %c0_i32_0 : i32, i32
  }
  func.func @transform_8(%arg0: i32) -> (i32, i32) {
    %c0_i32 = arith.constant 0 : i32
    %c0_i32_0 = arith.constant 0 : i32
    %c0_i32_1 = arith.constant 0 : i32
    return %c0_i32, %c0_i32_0 : i32, i32
  }
  func.func @transform_9(%arg0: i32) -> (i32, i32) {
    %c0_i32 = arith.constant 0 : i32
    %c0_i32_0 = arith.constant 0 : i32
    return %arg0, %c0_i32 : i32, i32
  }
}

</mosaic_0001>

<llo_original>
// kernel: neuro_network_forward.1
$region0: #{neuro_network_forward.1}
  #allocation0 [shape = 'u32[]', space=smem, size = 0x4, offset = 0x4, fixed_abs, tag = 'smem constant byte address 0x4 - core index']
  #allocation1 [shape = 'u32[72,128]{1,0:T(1,128)}', space=vmem, size = 0x9000, scoped, tag = 'internal scratch']
  %s0 = inlined_call_operand.vmem [shape: bf16[16,784], index: 0, kind: input, shape index: {}]
  %s1 = inlined_call_operand.vmem [shape: bf16[784,384], index: 1, kind: input, shape index: {}]
  %s2 = inlined_call_operand.vmem [shape: f32[1,384], index: 2, kind: input, shape index: {}]
  %s3 = inlined_call_operand.vmem [shape: bf16[384,256], index: 3, kind: input, shape index: {}]
  %s4 = inlined_call_operand.vmem [shape: f32[1,256], index: 4, kind: input, shape index: {}]
  %s5 = inlined_call_operand.vmem [shape: bf16[256,128], index: 5, kind: input, shape index: {}]
  %s6 = inlined_call_operand.vmem [shape: f32[1,128], index: 6, kind: input, shape index: {}]
  %s7 = inlined_call_operand.vmem [shape: bf16[128,128], index: 7, kind: input, shape index: {}]
  %s8 = inlined_call_operand.vmem [shape: f32[1,128], index: 8, kind: input, shape index: {}]
  %s9 = inlined_call_operand.vmem [shape: f32[16,128], index: 9, kind: output, shape index: {}]
  %s10 = sld [smem:[#allocation0]]
  $region46: #{neuro_network_forward.1} parent=0
    _
  %s12 = ssub.s32 1, %s10
  %s13 = scalar_select 0, %s12, %s10
  // Predicated region
  $region2: #{neuro_network_forward.1} parent=0 // pred_check
    _
  $region3: #{neuro_network_forward.1} parent=0 // pred_check_branch
    %15 = sbr.rel (0) target = $region5
  $region4: #{neuro_network_forward.1} parent=0 // pred_region
    _
  $region5: #{neuro_network_forward.1} parent=0 // pred_fallthru
    _
  // Predicated region
  $region6: #{neuro_network_forward.1} parent=0 // pred_check
    _
  $region7: #{neuro_network_forward.1} parent=0 // pred_check_branch
    %17 = sbr.rel (0) target = $region9
  $region8: #{neuro_network_forward.1} parent=0 // pred_region
    _
  $region9: #{neuro_network_forward.1} parent=0 // pred_fallthru
    _
  // Predicated region
  $region10: #{neuro_network_forward.1} parent=0 // pred_check
    _
  $region11: #{neuro_network_forward.1} parent=0 // pred_check_branch
    %19 = sbr.rel (0) target = $region13
  $region12: #{neuro_network_forward.1} parent=0 // pred_region
    _
  $region13: #{neuro_network_forward.1} parent=0 // pred_fallthru
    _
  // Predicated region
  $region14: #{neuro_network_forward.1} parent=0 // pred_check
    _
  $region15: #{neuro_network_forward.1} parent=0 // pred_check_branch
    %21 = sbr.rel (0) target = $region17
  $region16: #{neuro_network_forward.1} parent=0 // pred_region
    _
  $region17: #{neuro_network_forward.1} parent=0 // pred_fallthru
    _
  // Predicated region
  $region18: #{neuro_network_forward.1} parent=0 // pred_check
    _
  $region19: #{neuro_network_forward.1} parent=0 // pred_check_branch
    %23 = sbr.rel (0) target = $region21
  $region20: #{neuro_network_forward.1} parent=0 // pred_region
    _
  $region21: #{neuro_network_forward.1} parent=0 // pred_fallthru
    _
  // Predicated region
  $region22: #{neuro_network_forward.1} parent=0 // pred_check
    _
  $region23: #{neuro_network_forward.1} parent=0 // pred_check_branch
    %25 = sbr.rel (0) target = $region25
  $region24: #{neuro_network_forward.1} parent=0 // pred_region
    _
  $region25: #{neuro_network_forward.1} parent=0 // pred_fallthru
    _
  // Predicated region
  $region26: #{neuro_network_forward.1} parent=0 // pred_check
    _
  $region27: #{neuro_network_forward.1} parent=0 // pred_check_branch
    %27 = sbr.rel (0) target = $region29
  $region28: #{neuro_network_forward.1} parent=0 // pred_region
    _
  $region29: #{neuro_network_forward.1} parent=0 // pred_fallthru
    _
  // Predicated region
  $region30: #{neuro_network_forward.1} parent=0 // pred_check
    _
  $region31: #{neuro_network_forward.1} parent=0 // pred_check_branch
    %29 = sbr.rel (0) target = $region33
  $region32: #{neuro_network_forward.1} parent=0 // pred_region
    _
  $region33: #{neuro_network_forward.1} parent=0 // pred_fallthru
    _
  // Predicated region
  $region34: #{neuro_network_forward.1} parent=0 // pred_check
    _
  $region35: #{neuro_network_forward.1} parent=0 // pred_check_branch
    %31 = sbr.rel (0) target = $region37
  $region36: #{neuro_network_forward.1} parent=0 // pred_region
    _
  $region37: #{neuro_network_forward.1} parent=0 // pred_fallthru
    _
  %v33 = vld [vmem:[%s0] sm:$0xff]
  %v34 = vld [vmem:[%s0 + $0x8] sm:$0xff]
  %v35 = vld [vmem:[%s0 + $0x10] sm:$0xff]
  %v36 = vld [vmem:[%s0 + $0x18] sm:$0xf]
  %v37 = vld [vmem:[%s0 + $0x1c] sm:$0xff]
  %v38 = vld [vmem:[%s0 + $0x24] sm:$0xff]
  %v39 = vld [vmem:[%s0 + $0x2c] sm:$0xff]
  %v40 = vld [vmem:[%s0 + $0x34] sm:$0xf]
  %v41 = vld [vmem:[%s1] sm:$0xff]
  %v42 = vld [vmem:[%s1 + $0x8] sm:$0xf]
  %v43 = vld [vmem:[%s1 + $0xc] sm:$0xff]
  %v44 = vld [vmem:[%s1 + $0x14] sm:$0xf]
  %v45 = vld [vmem:[%s1 + $0x18] sm:$0xff]
  %v46 = vld [vmem:[%s1 + $0x20] sm:$0xf]
  %v47 = vld [vmem:[%s1 + $0x24] sm:$0xff]
  %v48 = vld [vmem:[%s1 + $0x2c] sm:$0xf]
  %v49 = vld [vmem:[%s1 + $0x30] sm:$0xff]
  %v50 = vld [vmem:[%s1 + $0x38] sm:$0xf]
  %v51 = vld [vmem:[%s1 + $0x3c] sm:$0xff]
  %v52 = vld [vmem:[%s1 + $0x44] sm:$0xf]
  %v53 = vld [vmem:[%s1 + $0x48] sm:$0xff]
  %v54 = vld [vmem:[%s1 + $0x50] sm:$0xf]
  %v55 = vld [vmem:[%s1 + $0x54] sm:$0xff]
  %v56 = vld [vmem:[%s1 + $0x5c] sm:$0xf]
  %v57 = vld [vmem:[%s1 + $0x60] sm:$0xff]
  %v58 = vld [vmem:[%s1 + $0x68] sm:$0xf]
  %v59 = vld [vmem:[%s1 + $0x6c] sm:$0xff]
  %v60 = vld [vmem:[%s1 + $0x74] sm:$0xf]
  %v61 = vld [vmem:[%s1 + $0x78] sm:$0xff]
  %v62 = vld [vmem:[%s1 + $0x80] sm:$0xf]
  %v63 = vld [vmem:[%s1 + $0x84] sm:$0xff]
  %v64 = vld [vmem:[%s1 + $0x8c] sm:$0xf]
  %v65 = vld [vmem:[%s1 + $0x90] sm:$0xff]
  %v66 = vld [vmem:[%s1 + $0x98] sm:$0xf]
  %v67 = vld [vmem:[%s1 + $0x9c] sm:$0xff]
  %v68 = vld [vmem:[%s1 + $0xa4] sm:$0xf]
  %v69 = vld [vmem:[%s1 + $0xa8] sm:$0xff]
  %v70 = vld [vmem:[%s1 + $0xb0] sm:$0xf]
  %v71 = vld [vmem:[%s1 + $0xb4] sm:$0xff]
  %v72 = vld [vmem:[%s1 + $0xbc] sm:$0xf]
  %v73 = vld [vmem:[%s1 + $0xc0] sm:$0xff]
  %v74 = vld [vmem:[%s1 + $0xc8] sm:$0xf]
  %v75 = vld [vmem:[%s1 + $0xcc] sm:$0xff]
  %v76 = vld [vmem:[%s1 + $0xd4] sm:$0xf]
  %v77 = vld [vmem:[%s1 + $0xd8] sm:$0xff]
  %v78 = vld [vmem:[%s1 + $0xe0] sm:$0xf]
  %v79 = vld [vmem:[%s1 + $0xe4] sm:$0xff]
  %v80 = vld [vmem:[%s1 + $0xec] sm:$0xf]
  %v81 = vld [vmem:[%s1 + $0xf0] sm:$0xff]
  %v82 = vld [vmem:[%s1 + $0xf8] sm:$0xf]
  %v83 = vld [vmem:[%s1 + $0xfc] sm:$0xff]
  %v84 = vld [vmem:[%s1 + $0x104] sm:$0xf]
  %v85 = vld [vmem:[%s1 + $0x108] sm:$0xff]
  %v86 = vld [vmem:[%s1 + $0x110] sm:$0xf]
  %v87 = vld [vmem:[%s1 + $0x114] sm:$0xff]
  %v88 = vld [vmem:[%s1 + $0x11c] sm:$0xf]
  %v89 = vld [vmem:[%s1 + $0x120] sm:$0xff]
  %v90 = vld [vmem:[%s1 + $0x128] sm:$0xf]
  %v91 = vld [vmem:[%s1 + $0x12c] sm:$0xff]
  %v92 = vld [vmem:[%s1 + $0x134] sm:$0xf]
  %v93 = vld [vmem:[%s1 + $0x138] sm:$0xff]
  %v94 = vld [vmem:[%s1 + $0x140] sm:$0xf]
  %v95 = vld [vmem:[%s1 + $0x144] sm:$0xff]
  %v96 = vld [vmem:[%s1 + $0x14c] sm:$0xf]
  %v97 = vld [vmem:[%s1 + $0x150] sm:$0xff]
  %v98 = vld [vmem:[%s1 + $0x158] sm:$0xf]
  %v99 = vld [vmem:[%s1 + $0x15c] sm:$0xff]
  %v100 = vld [vmem:[%s1 + $0x164] sm:$0xf]
  %v101 = vld [vmem:[%s1 + $0x168] sm:$0xff]
  %v102 = vld [vmem:[%s1 + $0x170] sm:$0xf]
  %v103 = vld [vmem:[%s1 + $0x174] sm:$0xff]
  %v104 = vld [vmem:[%s1 + $0x17c] sm:$0xf]
  %v105 = vld [vmem:[%s1 + $0x180] sm:$0xff]
  %v106 = vld [vmem:[%s1 + $0x188] sm:$0xf]
  %v107 = vld [vmem:[%s1 + $0x18c] sm:$0xff]
  %v108 = vld [vmem:[%s1 + $0x194] sm:$0xf]
  %v109 = vld [vmem:[%s1 + $0x198] sm:$0xff]
  %v110 = vld [vmem:[%s1 + $0x1a0] sm:$0xf]
  %v111 = vld [vmem:[%s1 + $0x1a4] sm:$0xff]
  %v112 = vld [vmem:[%s1 + $0x1ac] sm:$0xf]
  %v113 = vld [vmem:[%s1 + $0x1b0] sm:$0xff]
  %v114 = vld [vmem:[%s1 + $0x1b8] sm:$0xf]
  %v115 = vld [vmem:[%s1 + $0x1bc] sm:$0xff]
  %v116 = vld [vmem:[%s1 + $0x1c4] sm:$0xf]
  %v117 = vld [vmem:[%s1 + $0x1c8] sm:$0xff]
  %v118 = vld [vmem:[%s1 + $0x1d0] sm:$0xf]
  %v119 = vld [vmem:[%s1 + $0x1d4] sm:$0xff]
  %v120 = vld [vmem:[%s1 + $0x1dc] sm:$0xf]
  %v121 = vld [vmem:[%s1 + $0x1e0] sm:$0xff]
  %v122 = vld [vmem:[%s1 + $0x1e8] sm:$0xf]
  %v123 = vld [vmem:[%s1 + $0x1ec] sm:$0xff]
  %v124 = vld [vmem:[%s1 + $0x1f4] sm:$0xf]
  %v125 = vld [vmem:[%s1 + $0x1f8] sm:$0xff]
  %v126 = vld [vmem:[%s1 + $0x200] sm:$0xf]
  %v127 = vld [vmem:[%s1 + $0x204] sm:$0xff]
  %v128 = vld [vmem:[%s1 + $0x20c] sm:$0xf]
  %v129 = vld [vmem:[%s1 + $0x210] sm:$0xff]
  %v130 = vld [vmem:[%s1 + $0x218] sm:$0xf]
  %v131 = vld [vmem:[%s1 + $0x21c] sm:$0xff]
  %v132 = vld [vmem:[%s1 + $0x224] sm:$0xf]
  %v133 = vld [vmem:[%s1 + $0x228] sm:$0xff]
  %v134 = vld [vmem:[%s1 + $0x230] sm:$0xf]
  %v135 = vld [vmem:[%s1 + $0x234] sm:$0xff]
  %v136 = vld [vmem:[%s1 + $0x23c] sm:$0xf]
  %v137 = vld [vmem:[%s1 + $0x240] sm:$0xff]
  %v138 = vld [vmem:[%s1 + $0x248] sm:$0xf]
  %v139 = vld [vmem:[%s1 + $0x24c] sm:$0xff]
  %v140 = vld [vmem:[%s1 + $0x254] sm:$0xf]
  %v141 = vld [vmem:[%s1 + $0x258] sm:$0xff]
  %v142 = vld [vmem:[%s1 + $0x260] sm:$0xf]
  %v143 = vld [vmem:[%s1 + $0x264] sm:$0xff]
  %v144 = vld [vmem:[%s1 + $0x26c] sm:$0xf]
  %v145 = vld [vmem:[%s1 + $0x270] sm:$0xff]
  %v146 = vld [vmem:[%s1 + $0x278] sm:$0xf]
  %v147 = vld [vmem:[%s1 + $0x27c] sm:$0xff]
  %v148 = vld [vmem:[%s1 + $0x284] sm:$0xf]
  %v149 = vld [vmem:[%s1 + $0x288] sm:$0xff]
  %v150 = vld [vmem:[%s1 + $0x290] sm:$0xf]
  %v151 = vld [vmem:[%s1 + $0x294] sm:$0xff]
  %v152 = vld [vmem:[%s1 + $0x29c] sm:$0xf]
  %v153 = vld [vmem:[%s1 + $0x2a0] sm:$0xff]
  %v154 = vld [vmem:[%s1 + $0x2a8] sm:$0xf]
  %v155 = vld [vmem:[%s1 + $0x2ac] sm:$0xff]
  %v156 = vld [vmem:[%s1 + $0x2b4] sm:$0xf]
  %v157 = vld [vmem:[%s1 + $0x2b8] sm:$0xff]
  %v158 = vld [vmem:[%s1 + $0x2c0] sm:$0xf]
  %v159 = vld [vmem:[%s1 + $0x2c4] sm:$0xff]
  %v160 = vld [vmem:[%s1 + $0x2cc] sm:$0xf]
  %v161 = vld [vmem:[%s1 + $0x2d0] sm:$0xff]
  %v162 = vld [vmem:[%s1 + $0x2d8] sm:$0xf]
  %v163 = vld [vmem:[%s1 + $0x2dc] sm:$0xff]
  %v164 = vld [vmem:[%s1 + $0x2e4] sm:$0xf]
  %v165 = vld [vmem:[%s1 + $0x2e8] sm:$0xff]
  %v166 = vld [vmem:[%s1 + $0x2f0] sm:$0xf]
  %v167 = vld [vmem:[%s1 + $0x2f4] sm:$0xff]
  %v168 = vld [vmem:[%s1 + $0x2fc] sm:$0xf]
  %v169 = vld [vmem:[%s1 + $0x300] sm:$0xff]
  %v170 = vld [vmem:[%s1 + $0x308] sm:$0xf]
  %v171 = vld [vmem:[%s1 + $0x30c] sm:$0xff]
  %v172 = vld [vmem:[%s1 + $0x314] sm:$0xf]
  %v173 = vld [vmem:[%s1 + $0x318] sm:$0xff]
  %v174 = vld [vmem:[%s1 + $0x320] sm:$0xf]
  %v175 = vld [vmem:[%s1 + $0x324] sm:$0xff]
  %v176 = vld [vmem:[%s1 + $0x32c] sm:$0xf]
  %v177 = vld [vmem:[%s1 + $0x330] sm:$0xff]
  %v178 = vld [vmem:[%s1 + $0x338] sm:$0xf]
  %v179 = vld [vmem:[%s1 + $0x33c] sm:$0xff]
  %v180 = vld [vmem:[%s1 + $0x344] sm:$0xf]
  %v181 = vld [vmem:[%s1 + $0x348] sm:$0xff]
  %v182 = vld [vmem:[%s1 + $0x350] sm:$0xf]
  %v183 = vld [vmem:[%s1 + $0x354] sm:$0xff]
  %v184 = vld [vmem:[%s1 + $0x35c] sm:$0xf]
  %v185 = vld [vmem:[%s1 + $0x360] sm:$0xff]
  %v186 = vld [vmem:[%s1 + $0x368] sm:$0xf]
  %v187 = vld [vmem:[%s1 + $0x36c] sm:$0xff]
  %v188 = vld [vmem:[%s1 + $0x374] sm:$0xf]
  %v189 = vld [vmem:[%s1 + $0x378] sm:$0xff]
  %v190 = vld [vmem:[%s1 + $0x380] sm:$0xf]
  %v191 = vld [vmem:[%s1 + $0x384] sm:$0xff]
  %v192 = vld [vmem:[%s1 + $0x38c] sm:$0xf]
  %v193 = vld [vmem:[%s1 + $0x390] sm:$0xff]
  %v194 = vld [vmem:[%s1 + $0x398] sm:$0xf]
  %v195 = vld [vmem:[%s1 + $0x39c] sm:$0xff]
  %v196 = vld [vmem:[%s1 + $0x3a4] sm:$0xf]
  %v197 = vld [vmem:[%s1 + $0x3a8] sm:$0xff]
  %v198 = vld [vmem:[%s1 + $0x3b0] sm:$0xf]
  %v199 = vld [vmem:[%s1 + $0x3b4] sm:$0xff]
  %v200 = vld [vmem:[%s1 + $0x3bc] sm:$0xf]
  %v201 = vld [vmem:[%s1 + $0x3c0] sm:$0xff]
  %v202 = vld [vmem:[%s1 + $0x3c8] sm:$0xf]
  %v203 = vld [vmem:[%s1 + $0x3cc] sm:$0xff]
  %v204 = vld [vmem:[%s1 + $0x3d4] sm:$0xf]
  %v205 = vld [vmem:[%s1 + $0x3d8] sm:$0xff]
  %v206 = vld [vmem:[%s1 + $0x3e0] sm:$0xf]
  %v207 = vld [vmem:[%s1 + $0x3e4] sm:$0xff]
  %v208 = vld [vmem:[%s1 + $0x3ec] sm:$0xf]
  %v209 = vld [vmem:[%s1 + $0x3f0] sm:$0xff]
  %v210 = vld [vmem:[%s1 + $0x3f8] sm:$0xf]
  %v211 = vld [vmem:[%s1 + $0x3fc] sm:$0xff]
  %v212 = vld [vmem:[%s1 + $0x404] sm:$0xf]
  %v213 = vld [vmem:[%s1 + $0x408] sm:$0xff]
  %v214 = vld [vmem:[%s1 + $0x410] sm:$0xf]
  %v215 = vld [vmem:[%s1 + $0x414] sm:$0xff]
  %v216 = vld [vmem:[%s1 + $0x41c] sm:$0xf]
  %v217 = vld [vmem:[%s1 + $0x420] sm:$0xff]
  %v218 = vld [vmem:[%s1 + $0x428] sm:$0xf]
  %v219 = vld [vmem:[%s1 + $0x42c] sm:$0xff]
  %v220 = vld [vmem:[%s1 + $0x434] sm:$0xf]
  %v221 = vld [vmem:[%s1 + $0x438] sm:$0xff]
  %v222 = vld [vmem:[%s1 + $0x440] sm:$0xf]
  %v223 = vld [vmem:[%s1 + $0x444] sm:$0xff]
  %v224 = vld [vmem:[%s1 + $0x44c] sm:$0xf]
  %v225 = vld [vmem:[%s1 + $0x450] sm:$0xff]
  %v226 = vld [vmem:[%s1 + $0x458] sm:$0xf]
  %v227 = vld [vmem:[%s1 + $0x45c] sm:$0xff]
  %v228 = vld [vmem:[%s1 + $0x464] sm:$0xf]
  %v229 = vld [vmem:[%s1 + $0x468] sm:$0xff]
  %v230 = vld [vmem:[%s1 + $0x470] sm:$0xf]
  %v231 = vld [vmem:[%s1 + $0x474] sm:$0xff]
  %v232 = vld [vmem:[%s1 + $0x47c] sm:$0xf]
  %v233 = vld [vmem:[%s1 + $0x480] sm:$0xff]
  %v234 = vld [vmem:[%s1 + $0x488] sm:$0xf]
  %v235 = vld [vmem:[%s1 + $0x48c] sm:$0xff]
  %v236 = vld [vmem:[%s1 + $0x494] sm:$0xf]
  %v237 = vld [vmem:[%s2] sm:$0x7]
  %v239 = vperm.slane %v237, 0
  %v240 = vperm.slane %v237, 1
  %v241 = vperm.slane %v237, 2
  %v253 = vunpack.c.l.b16 %v33
  %v254 = vunpack.c.h.b16 %v33
  %v255 = vunpack.c.l.b16 %v34
  %v256 = vunpack.c.h.b16 %v34
  %v257 = vunpack.c.l.b16 %v35
  %v258 = vunpack.c.h.b16 %v35
  %v259 = vunpack.c.l.b16 %v36
  %v260 = vunpack.c.l.b16 %v37
  %v261 = vunpack.c.h.b16 %v37
  %v262 = vunpack.c.l.b16 %v38
  %v263 = vunpack.c.h.b16 %v38
  %v264 = vunpack.c.l.b16 %v39
  %v265 = vunpack.c.h.b16 %v39
  %v266 = vunpack.c.l.b16 %v40
  %v267 = vpack.c.b16 %v260, %v253
  %v268 = vpack.c.b16 %v261, %v254
  %v269 = vpack.c.b16 %v262, %v255
  %v270 = vpack.c.b16 %v263, %v256
  %v271 = vpack.c.b16 %v264, %v257
  %v272 = vpack.c.b16 %v265, %v258
  %v273 = vpack.c.b16 %v266, %v259
  %v476 = vunpack.c.l.b16 %v41
  %v477 = vunpack.c.h.b16 %v41
  %v478 = vunpack.c.l.b16 %v42
  %v479 = vunpack.c.l.b16 %v43
  %v480 = vunpack.c.h.b16 %v43
  %v481 = vunpack.c.l.b16 %v44
  %v482 = vunpack.c.l.b16 %v45
  %v483 = vunpack.c.h.b16 %v45
  %v484 = vunpack.c.l.b16 %v46
  %v485 = vunpack.c.l.b16 %v47
  %v486 = vunpack.c.h.b16 %v47
  %v487 = vunpack.c.l.b16 %v48
  %v488 = vunpack.c.l.b16 %v49
  %v489 = vunpack.c.h.b16 %v49
  %v490 = vunpack.c.l.b16 %v50
  %v491 = vunpack.c.l.b16 %v51
  %v492 = vunpack.c.h.b16 %v51
  %v493 = vunpack.c.l.b16 %v52
  %v494 = vunpack.c.l.b16 %v53
  %v495 = vunpack.c.h.b16 %v53
  %v496 = vunpack.c.l.b16 %v54
  %v497 = vunpack.c.l.b16 %v55
  %v498 = vunpack.c.h.b16 %v55
  %v499 = vunpack.c.l.b16 %v56
  %v500 = vunpack.c.l.b16 %v57
  %v501 = vunpack.c.h.b16 %v57
  %v502 = vunpack.c.l.b16 %v58
  %v503 = vunpack.c.l.b16 %v59
  %v504 = vunpack.c.h.b16 %v59
  %v505 = vunpack.c.l.b16 %v60
  %v506 = vunpack.c.l.b16 %v61
  %v507 = vunpack.c.h.b16 %v61
  %v508 = vunpack.c.l.b16 %v62
  %v509 = vunpack.c.l.b16 %v63
  %v510 = vunpack.c.h.b16 %v63
  %v511 = vunpack.c.l.b16 %v64
  %v512 = vunpack.c.l.b16 %v65
  %v513 = vunpack.c.h.b16 %v65
  %v514 = vunpack.c.l.b16 %v66
  %v515 = vunpack.c.l.b16 %v67
  %v516 = vunpack.c.h.b16 %v67
  %v517 = vunpack.c.l.b16 %v68
  %v518 = vunpack.c.l.b16 %v69
  %v519 = vunpack.c.h.b16 %v69
  %v520 = vunpack.c.l.b16 %v70
  %v521 = vunpack.c.l.b16 %v71
  %v522 = vunpack.c.h.b16 %v71
  %v523 = vunpack.c.l.b16 %v72
  %v524 = vunpack.c.l.b16 %v73
  %v525 = vunpack.c.h.b16 %v73
  %v526 = vunpack.c.l.b16 %v74
  %v527 = vunpack.c.l.b16 %v75
  %v528 = vunpack.c.h.b16 %v75
  %v529 = vunpack.c.l.b16 %v76
  %v530 = vunpack.c.l.b16 %v77
  %v531 = vunpack.c.h.b16 %v77
  %v532 = vunpack.c.l.b16 %v78
  %v533 = vunpack.c.l.b16 %v79
  %v534 = vunpack.c.h.b16 %v79
  %v535 = vunpack.c.l.b16 %v80
  %v536 = vunpack.c.l.b16 %v81
  %v537 = vunpack.c.h.b16 %v81
  %v538 = vunpack.c.l.b16 %v82
  %v539 = vunpack.c.l.b16 %v83
  %v540 = vunpack.c.h.b16 %v83
  %v541 = vunpack.c.l.b16 %v84
  %v542 = vunpack.c.l.b16 %v85
  %v543 = vunpack.c.h.b16 %v85
  %v544 = vunpack.c.l.b16 %v86
  %v545 = vunpack.c.l.b16 %v87
  %v546 = vunpack.c.h.b16 %v87
  %v547 = vunpack.c.l.b16 %v88
  %v548 = vunpack.c.l.b16 %v89
  %v549 = vunpack.c.h.b16 %v89
  %v550 = vunpack.c.l.b16 %v90
  %v551 = vunpack.c.l.b16 %v91
  %v552 = vunpack.c.h.b16 %v91
  %v553 = vunpack.c.l.b16 %v92
  %v554 = vunpack.c.l.b16 %v93
  %v555 = vunpack.c.h.b16 %v93
  %v556 = vunpack.c.l.b16 %v94
  %v557 = vunpack.c.l.b16 %v95
  %v558 = vunpack.c.h.b16 %v95
  %v559 = vunpack.c.l.b16 %v96
  %v560 = vunpack.c.l.b16 %v97
  %v561 = vunpack.c.h.b16 %v97
  %v562 = vunpack.c.l.b16 %v98
  %v563 = vunpack.c.l.b16 %v99
  %v564 = vunpack.c.h.b16 %v99
  %v565 = vunpack.c.l.b16 %v100
  %v566 = vunpack.c.l.b16 %v101
  %v567 = vunpack.c.h.b16 %v101
  %v568 = vunpack.c.l.b16 %v102
  %v569 = vunpack.c.l.b16 %v103
  %v570 = vunpack.c.h.b16 %v103
  %v571 = vunpack.c.l.b16 %v104
  %v572 = vunpack.c.l.b16 %v105
  %v573 = vunpack.c.h.b16 %v105
  %v574 = vunpack.c.l.b16 %v106
  %v575 = vunpack.c.l.b16 %v107
  %v576 = vunpack.c.h.b16 %v107
  %v577 = vunpack.c.l.b16 %v108
  %v578 = vunpack.c.l.b16 %v109
  %v579 = vunpack.c.h.b16 %v109
  %v580 = vunpack.c.l.b16 %v110
  %v581 = vunpack.c.l.b16 %v111
  %v582 = vunpack.c.h.b16 %v111
  %v583 = vunpack.c.l.b16 %v112
  %v584 = vunpack.c.l.b16 %v113
  %v585 = vunpack.c.h.b16 %v113
  %v586 = vunpack.c.l.b16 %v114
  %v587 = vunpack.c.l.b16 %v115
  %v588 = vunpack.c.h.b16 %v115
  %v589 = vunpack.c.l.b16 %v116
  %v590 = vunpack.c.l.b16 %v117
  %v591 = vunpack.c.h.b16 %v117
  %v592 = vunpack.c.l.b16 %v118
  %v593 = vunpack.c.l.b16 %v119
  %v594 = vunpack.c.h.b16 %v119
  %v595 = vunpack.c.l.b16 %v120
  %v596 = vunpack.c.l.b16 %v121
  %v597 = vunpack.c.h.b16 %v121
  %v598 = vunpack.c.l.b16 %v122
  %v599 = vunpack.c.l.b16 %v123
  %v600 = vunpack.c.h.b16 %v123
  %v601 = vunpack.c.l.b16 %v124
  %v602 = vunpack.c.l.b16 %v125
  %v603 = vunpack.c.h.b16 %v125
  %v604 = vunpack.c.l.b16 %v126
  %v605 = vunpack.c.l.b16 %v127
  %v606 = vunpack.c.h.b16 %v127
  %v607 = vunpack.c.l.b16 %v128
  %v608 = vunpack.c.l.b16 %v129
  %v609 = vunpack.c.h.b16 %v129
  %v610 = vunpack.c.l.b16 %v130
  %v611 = vunpack.c.l.b16 %v131
  %v612 = vunpack.c.h.b16 %v131
  %v613 = vunpack.c.l.b16 %v132
  %v614 = vunpack.c.l.b16 %v133
  %v615 = vunpack.c.h.b16 %v133
  %v616 = vunpack.c.l.b16 %v134
  %v617 = vunpack.c.l.b16 %v135
  %v618 = vunpack.c.h.b16 %v135
  %v619 = vunpack.c.l.b16 %v136
  %v620 = vunpack.c.l.b16 %v137
  %v621 = vunpack.c.h.b16 %v137
  %v622 = vunpack.c.l.b16 %v138
  %v623 = vunpack.c.l.b16 %v139
  %v624 = vunpack.c.h.b16 %v139
  %v625 = vunpack.c.l.b16 %v140
  %v626 = vunpack.c.l.b16 %v141
  %v627 = vunpack.c.h.b16 %v141
  %v628 = vunpack.c.l.b16 %v142
  %v629 = vunpack.c.l.b16 %v143
  %v630 = vunpack.c.h.b16 %v143
  %v631 = vunpack.c.l.b16 %v144
  %v632 = vunpack.c.l.b16 %v145
  %v633 = vunpack.c.h.b16 %v145
  %v634 = vunpack.c.l.b16 %v146
  %v635 = vunpack.c.l.b16 %v147
  %v636 = vunpack.c.h.b16 %v147
  %v637 = vunpack.c.l.b16 %v148
  %v638 = vunpack.c.l.b16 %v149
  %v639 = vunpack.c.h.b16 %v149
  %v640 = vunpack.c.l.b16 %v150
  %v641 = vunpack.c.l.b16 %v151
  %v642 = vunpack.c.h.b16 %v151
  %v643 = vunpack.c.l.b16 %v152
  %v644 = vunpack.c.l.b16 %v153
  %v645 = vunpack.c.h.b16 %v153
  %v646 = vunpack.c.l.b16 %v154
  %v647 = vunpack.c.l.b16 %v155
  %v648 = vunpack.c.h.b16 %v155
  %v649 = vunpack.c.l.b16 %v156
  %v650 = vunpack.c.l.b16 %v157
  %v651 = vunpack.c.h.b16 %v157
  %v652 = vunpack.c.l.b16 %v158
  %v653 = vunpack.c.l.b16 %v159
  %v654 = vunpack.c.h.b16 %v159
  %v655 = vunpack.c.l.b16 %v160
  %v656 = vunpack.c.l.b16 %v161
  %v657 = vunpack.c.h.b16 %v161
  %v658 = vunpack.c.l.b16 %v162
  %v659 = vunpack.c.l.b16 %v163
  %v660 = vunpack.c.h.b16 %v163
  %v661 = vunpack.c.l.b16 %v164
  %v662 = vunpack.c.l.b16 %v165
  %v663 = vunpack.c.h.b16 %v165
  %v664 = vunpack.c.l.b16 %v166
  %v665 = vunpack.c.l.b16 %v167
  %v666 = vunpack.c.h.b16 %v167
  %v667 = vunpack.c.l.b16 %v168
  %v668 = vunpack.c.l.b16 %v169
  %v669 = vunpack.c.h.b16 %v169
  %v670 = vunpack.c.l.b16 %v170
  %v671 = vunpack.c.l.b16 %v171
  %v672 = vunpack.c.h.b16 %v171
  %v673 = vunpack.c.l.b16 %v172
  %v674 = vunpack.c.l.b16 %v173
  %v675 = vunpack.c.h.b16 %v173
  %v676 = vunpack.c.l.b16 %v174
  %v677 = vunpack.c.l.b16 %v175
  %v678 = vunpack.c.h.b16 %v175
  %v679 = vunpack.c.l.b16 %v176
  %v680 = vunpack.c.l.b16 %v177
  %v681 = vunpack.c.h.b16 %v177
  %v682 = vunpack.c.l.b16 %v178
  %v683 = vunpack.c.l.b16 %v179
  %v684 = vunpack.c.h.b16 %v179
  %v685 = vunpack.c.l.b16 %v180
  %v686 = vunpack.c.l.b16 %v181
  %v687 = vunpack.c.h.b16 %v181
  %v688 = vunpack.c.l.b16 %v182
  %v689 = vunpack.c.l.b16 %v183
  %v690 = vunpack.c.h.b16 %v183
  %v691 = vunpack.c.l.b16 %v184
  %v692 = vunpack.c.l.b16 %v185
  %v693 = vunpack.c.h.b16 %v185
  %v694 = vunpack.c.l.b16 %v186
  %v695 = vunpack.c.l.b16 %v187
  %v696 = vunpack.c.h.b16 %v187
  %v697 = vunpack.c.l.b16 %v188
  %v698 = vunpack.c.l.b16 %v189
  %v699 = vunpack.c.h.b16 %v189
  %v700 = vunpack.c.l.b16 %v190
  %v701 = vunpack.c.l.b16 %v191
  %v702 = vunpack.c.h.b16 %v191
  %v703 = vunpack.c.l.b16 %v192
  %v704 = vunpack.c.l.b16 %v193
  %v705 = vunpack.c.h.b16 %v193
  %v706 = vunpack.c.l.b16 %v194
  %v707 = vunpack.c.l.b16 %v195
  %v708 = vunpack.c.h.b16 %v195
  %v709 = vunpack.c.l.b16 %v196
  %v710 = vunpack.c.l.b16 %v197
  %v711 = vunpack.c.h.b16 %v197
  %v712 = vunpack.c.l.b16 %v198
  %v713 = vunpack.c.l.b16 %v199
  %v714 = vunpack.c.h.b16 %v199
  %v715 = vunpack.c.l.b16 %v200
  %v716 = vunpack.c.l.b16 %v201
  %v717 = vunpack.c.h.b16 %v201
  %v718 = vunpack.c.l.b16 %v202
  %v719 = vunpack.c.l.b16 %v203
  %v720 = vunpack.c.h.b16 %v203
  %v721 = vunpack.c.l.b16 %v204
  %v722 = vunpack.c.l.b16 %v205
  %v723 = vunpack.c.h.b16 %v205
  %v724 = vunpack.c.l.b16 %v206
  %v725 = vunpack.c.l.b16 %v207
  %v726 = vunpack.c.h.b16 %v207
  %v727 = vunpack.c.l.b16 %v208
  %v728 = vunpack.c.l.b16 %v209
  %v729 = vunpack.c.h.b16 %v209
  %v730 = vunpack.c.l.b16 %v210
  %v731 = vunpack.c.l.b16 %v211
  %v732 = vunpack.c.h.b16 %v211
  %v733 = vunpack.c.l.b16 %v212
  %v734 = vunpack.c.l.b16 %v213
  %v735 = vunpack.c.h.b16 %v213
  %v736 = vunpack.c.l.b16 %v214
  %v737 = vunpack.c.l.b16 %v215
  %v738 = vunpack.c.h.b16 %v215
  %v739 = vunpack.c.l.b16 %v216
  %v740 = vunpack.c.l.b16 %v217
  %v741 = vunpack.c.h.b16 %v217
  %v742 = vunpack.c.l.b16 %v218
  %v743 = vunpack.c.l.b16 %v219
  %v744 = vunpack.c.h.b16 %v219
  %v745 = vunpack.c.l.b16 %v220
  %v746 = vunpack.c.l.b16 %v221
  %v747 = vunpack.c.h.b16 %v221
  %v748 = vunpack.c.l.b16 %v222
  %v749 = vunpack.c.l.b16 %v223
  %v750 = vunpack.c.h.b16 %v223
  %v751 = vunpack.c.l.b16 %v224
  %v752 = vunpack.c.l.b16 %v225
  %v753 = vunpack.c.h.b16 %v225
  %v754 = vunpack.c.l.b16 %v226
  %v755 = vunpack.c.l.b16 %v227
  %v756 = vunpack.c.h.b16 %v227
  %v757 = vunpack.c.l.b16 %v228
  %v758 = vunpack.c.l.b16 %v229
  %v759 = vunpack.c.h.b16 %v229
  %v760 = vunpack.c.l.b16 %v230
  %v761 = vunpack.c.l.b16 %v231
  %v762 = vunpack.c.h.b16 %v231
  %v763 = vunpack.c.l.b16 %v232
  %v764 = vunpack.c.l.b16 %v233
  %v765 = vunpack.c.h.b16 %v233
  %v766 = vunpack.c.l.b16 %v234
  %v767 = vunpack.c.l.b16 %v235
  %v768 = vunpack.c.h.b16 %v235
  %v769 = vunpack.c.l.b16 %v236
  %v770 = vpack.c.b16 %v479, %v476
  %v771 = vpack.c.b16 %v480, %v477
  %v772 = vpack.c.b16 %v481, %v478
  %v773 = vpack.c.b16 %v485, %v482
  %v774 = vpack.c.b16 %v486, %v483
  %v775 = vpack.c.b16 %v487, %v484
  %v776 = vpack.c.b16 %v491, %v488
  %v777 = vpack.c.b16 %v492, %v489
  %v778 = vpack.c.b16 %v493, %v490
  %v779 = vpack.c.b16 %v497, %v494
  %v780 = vpack.c.b16 %v498, %v495
  %v781 = vpack.c.b16 %v499, %v496
  %v782 = vpack.c.b16 %v503, %v500
  %v783 = vpack.c.b16 %v504, %v501
  %v784 = vpack.c.b16 %v505, %v502
  %v785 = vpack.c.b16 %v509, %v506
  %v786 = vpack.c.b16 %v510, %v507
  %v787 = vpack.c.b16 %v511, %v508
  %v788 = vpack.c.b16 %v515, %v512
  %v789 = vpack.c.b16 %v516, %v513
  %v790 = vpack.c.b16 %v517, %v514
  %v791 = vpack.c.b16 %v521, %v518
  %v792 = vpack.c.b16 %v522, %v519
  %v793 = vpack.c.b16 %v523, %v520
  %v794 = vpack.c.b16 %v527, %v524
  %v795 = vpack.c.b16 %v528, %v525
  %v796 = vpack.c.b16 %v529, %v526
  %v797 = vpack.c.b16 %v533, %v530
  %v798 = vpack.c.b16 %v534, %v531
  %v799 = vpack.c.b16 %v535, %v532
  %v800 = vpack.c.b16 %v539, %v536
  %v801 = vpack.c.b16 %v540, %v537
  %v802 = vpack.c.b16 %v541, %v538
  %v803 = vpack.c.b16 %v545, %v542
  %v804 = vpack.c.b16 %v546, %v543
  %v805 = vpack.c.b16 %v547, %v544
  %v806 = vpack.c.b16 %v551, %v548
  %v807 = vpack.c.b16 %v552, %v549
  %v808 = vpack.c.b16 %v553, %v550
  %v809 = vpack.c.b16 %v557, %v554
  %v810 = vpack.c.b16 %v558, %v555
  %v811 = vpack.c.b16 %v559, %v556
  %v812 = vpack.c.b16 %v563, %v560
  %v813 = vpack.c.b16 %v564, %v561
  %v814 = vpack.c.b16 %v565, %v562
  %v815 = vpack.c.b16 %v569, %v566
  %v816 = vpack.c.b16 %v570, %v567
  %v817 = vpack.c.b16 %v571, %v568
  %v818 = vpack.c.b16 %v575, %v572
  %v819 = vpack.c.b16 %v576, %v573
  %v820 = vpack.c.b16 %v577, %v574
  %v821 = vpack.c.b16 %v581, %v578
  %v822 = vpack.c.b16 %v582, %v579
  %v823 = vpack.c.b16 %v583, %v580
  %v824 = vpack.c.b16 %v587, %v584
  %v825 = vpack.c.b16 %v588, %v585
  %v826 = vpack.c.b16 %v589, %v586
  %v827 = vpack.c.b16 %v593, %v590
  %v828 = vpack.c.b16 %v594, %v591
  %v829 = vpack.c.b16 %v595, %v592
  %v830 = vpack.c.b16 %v599, %v596
  %v831 = vpack.c.b16 %v600, %v597
  %v832 = vpack.c.b16 %v601, %v598
  %v833 = vpack.c.b16 %v605, %v602
  %v834 = vpack.c.b16 %v606, %v603
  %v835 = vpack.c.b16 %v607, %v604
  %v836 = vpack.c.b16 %v611, %v608
  %v837 = vpack.c.b16 %v612, %v609
  %v838 = vpack.c.b16 %v613, %v610
  %v839 = vpack.c.b16 %v617, %v614
  %v840 = vpack.c.b16 %v618, %v615
  %v841 = vpack.c.b16 %v619, %v616
  %v842 = vpack.c.b16 %v623, %v620
  %v843 = vpack.c.b16 %v624, %v621
  %v844 = vpack.c.b16 %v625, %v622
  %v845 = vpack.c.b16 %v629, %v626
  %v846 = vpack.c.b16 %v630, %v627
  %v847 = vpack.c.b16 %v631, %v628
  %v848 = vpack.c.b16 %v635, %v632
  %v849 = vpack.c.b16 %v636, %v633
  %v850 = vpack.c.b16 %v637, %v634
  %v851 = vpack.c.b16 %v641, %v638
  %v852 = vpack.c.b16 %v642, %v639
  %v853 = vpack.c.b16 %v643, %v640
  %v854 = vpack.c.b16 %v647, %v644
  %v855 = vpack.c.b16 %v648, %v645
  %v856 = vpack.c.b16 %v649, %v646
  %v857 = vpack.c.b16 %v653, %v650
  %v858 = vpack.c.b16 %v654, %v651
  %v859 = vpack.c.b16 %v655, %v652
  %v860 = vpack.c.b16 %v659, %v656
  %v861 = vpack.c.b16 %v660, %v657
  %v862 = vpack.c.b16 %v661, %v658
  %v863 = vpack.c.b16 %v665, %v662
  %v864 = vpack.c.b16 %v666, %v663
  %v865 = vpack.c.b16 %v667, %v664
  %v866 = vpack.c.b16 %v671, %v668
  %v867 = vpack.c.b16 %v672, %v669
  %v868 = vpack.c.b16 %v673, %v670
  %v869 = vpack.c.b16 %v677, %v674
  %v870 = vpack.c.b16 %v678, %v675
  %v871 = vpack.c.b16 %v679, %v676
  %v872 = vpack.c.b16 %v683, %v680
  %v873 = vpack.c.b16 %v684, %v681
  %v874 = vpack.c.b16 %v685, %v682
  %v875 = vpack.c.b16 %v689, %v686
  %v876 = vpack.c.b16 %v690, %v687
  %v877 = vpack.c.b16 %v691, %v688
  %v878 = vpack.c.b16 %v695, %v692
  %v879 = vpack.c.b16 %v696, %v693
  %v880 = vpack.c.b16 %v697, %v694
  %v881 = vpack.c.b16 %v701, %v698
  %v882 = vpack.c.b16 %v702, %v699
  %v883 = vpack.c.b16 %v703, %v700
  %v884 = vpack.c.b16 %v707, %v704
  %v885 = vpack.c.b16 %v708, %v705
  %v886 = vpack.c.b16 %v709, %v706
  %v887 = vpack.c.b16 %v713, %v710
  %v888 = vpack.c.b16 %v714, %v711
  %v889 = vpack.c.b16 %v715, %v712
  %v890 = vpack.c.b16 %v719, %v716
  %v891 = vpack.c.b16 %v720, %v717
  %v892 = vpack.c.b16 %v721, %v718
  %v893 = vpack.c.b16 %v725, %v722
  %v894 = vpack.c.b16 %v726, %v723
  %v895 = vpack.c.b16 %v727, %v724
  %v896 = vpack.c.b16 %v731, %v728
  %v897 = vpack.c.b16 %v732, %v729
  %v898 = vpack.c.b16 %v733, %v730
  %v899 = vpack.c.b16 %v737, %v734
  %v900 = vpack.c.b16 %v738, %v735
  %v901 = vpack.c.b16 %v739, %v736
  %v902 = vpack.c.b16 %v743, %v740
  %v903 = vpack.c.b16 %v744, %v741
  %v904 = vpack.c.b16 %v745, %v742
  %v905 = vpack.c.b16 %v749, %v746
  %v906 = vpack.c.b16 %v750, %v747
  %v907 = vpack.c.b16 %v751, %v748
  %v908 = vpack.c.b16 %v755, %v752
  %v909 = vpack.c.b16 %v756, %v753
  %v910 = vpack.c.b16 %v757, %v754
  %v911 = vpack.c.b16 %v761, %v758
  %v912 = vpack.c.b16 %v762, %v759
  %v913 = vpack.c.b16 %v763, %v760
  %v914 = vpack.c.b16 %v767, %v764
  %v915 = vpack.c.b16 %v768, %v765
  %v916 = vpack.c.b16 %v769, %v766
  %vm1064 = vcmask 130048
  %v1066 = vsel %vm1064, %v273, 0
  %1068 = vmatpush.bf16.msra.mxu0 %v791
  %1069 = vmatpush.bf16.msra.mxu0 %v788
  %1070 = vmatpush.bf16.msra.mxu0 %v785
  %1071 = vmatpush.bf16.msra.mxu0 %v782
  %1072 = vmatpush.bf16.msra.mxu0 %v779
  %1073 = vmatpush.bf16.msra.mxu0 %v776
  %1074 = vmatpush.bf16.msra.mxu0 %v773
  %1075 = vmatpush.bf16.msra.mxu0 %v770
  %1076 = vmatmul.bf16.gmra.mxu0 %v267
  %v1077 = vpop.f32.mrf.mxu0
  %v1078 = vadd.f32 %v239, %v1077
  %v1079 = vpop.f32.mrf.mxu0
  %v1080 = vadd.f32 %v239, %v1079
  %1081 = vdwg.mxu0
  %1082 = vmatpush.bf16.msra.mxu0 %v815
  %1083 = vmatpush.bf16.msra.mxu0 %v812
  %1084 = vmatpush.bf16.msra.mxu0 %v809
  %1085 = vmatpush.bf16.msra.mxu0 %v806
  %1086 = vmatpush.bf16.msra.mxu0 %v803
  %1087 = vmatpush.bf16.msra.mxu0 %v800
  %1088 = vmatpush.bf16.msra.mxu0 %v797
  %1089 = vmatpush.bf16.msra.mxu0 %v794
  %1090 = vmatmul.bf16.gmra.mxu0 %v268
  %v1091 = vpop.f32.mrf.mxu0
  %v1092 = vadd.f32 %v1078, %v1091
  %v1093 = vpop.f32.mrf.mxu0
  %v1094 = vadd.f32 %v1080, %v1093
  %1095 = vdwg.mxu0
  %1096 = vmatpush.bf16.msra.mxu0 %v839
  %1097 = vmatpush.bf16.msra.mxu0 %v836
  %1098 = vmatpush.bf16.msra.mxu0 %v833
  %1099 = vmatpush.bf16.msra.mxu0 %v830
  %1100 = vmatpush.bf16.msra.mxu0 %v827
  %1101 = vmatpush.bf16.msra.mxu0 %v824
  %1102 = vmatpush.bf16.msra.mxu0 %v821
  %1103 = vmatpush.bf16.msra.mxu0 %v818
  %1104 = vmatmul.bf16.gmra.mxu0 %v269
  %v1105 = vpop.f32.mrf.mxu0
  %v1106 = vadd.f32 %v1092, %v1105
  %v1107 = vpop.f32.mrf.mxu0
  %v1108 = vadd.f32 %v1094, %v1107
  %1109 = vdwg.mxu0
  %1110 = vmatpush.bf16.msra.mxu0 %v863
  %1111 = vmatpush.bf16.msra.mxu0 %v860
  %1112 = vmatpush.bf16.msra.mxu0 %v857
  %1113 = vmatpush.bf16.msra.mxu0 %v854
  %1114 = vmatpush.bf16.msra.mxu0 %v851
  %1115 = vmatpush.bf16.msra.mxu0 %v848
  %1116 = vmatpush.bf16.msra.mxu0 %v845
  %1117 = vmatpush.bf16.msra.mxu0 %v842
  %1118 = vmatmul.bf16.gmra.mxu0 %v270
  %v1119 = vpop.f32.mrf.mxu0
  %v1120 = vadd.f32 %v1106, %v1119
  %v1121 = vpop.f32.mrf.mxu0
  %v1122 = vadd.f32 %v1108, %v1121
  %1123 = vdwg.mxu0
  %1124 = vmatpush.bf16.msra.mxu0 %v887
  %1125 = vmatpush.bf16.msra.mxu0 %v884
  %1126 = vmatpush.bf16.msra.mxu0 %v881
  %1127 = vmatpush.bf16.msra.mxu0 %v878
  %1128 = vmatpush.bf16.msra.mxu0 %v875
  %1129 = vmatpush.bf16.msra.mxu0 %v872
  %1130 = vmatpush.bf16.msra.mxu0 %v869
  %1131 = vmatpush.bf16.msra.mxu0 %v866
  %1132 = vmatmul.bf16.gmra.mxu0 %v271
  %v1133 = vpop.f32.mrf.mxu0
  %v1134 = vadd.f32 %v1120, %v1133
  %v1135 = vpop.f32.mrf.mxu0
  %v1136 = vadd.f32 %v1122, %v1135
  %1137 = vdwg.mxu0
  %1138 = vmatpush.bf16.msra.mxu0 %v911
  %1139 = vmatpush.bf16.msra.mxu0 %v908
  %1140 = vmatpush.bf16.msra.mxu0 %v905
  %1141 = vmatpush.bf16.msra.mxu0 %v902
  %1142 = vmatpush.bf16.msra.mxu0 %v899
  %1143 = vmatpush.bf16.msra.mxu0 %v896
  %1144 = vmatpush.bf16.msra.mxu0 %v893
  %1145 = vmatpush.bf16.msra.mxu0 %v890
  %1146 = vmatmul.bf16.gmra.mxu0 %v272
  %v1147 = vpop.f32.mrf.mxu0
  %v1148 = vadd.f32 %v1134, %v1147
  %v1149 = vpop.f32.mrf.mxu0
  %v1150 = vadd.f32 %v1136, %v1149
  %1151 = vdwg.mxu0
  %1152 = vmatpush.bf16.msra.mxu0 0
  %1153 = vmatpush.bf16.msra.mxu0 0
  %1154 = vmatpush.bf16.msra.mxu0 0
  %1155 = vmatpush.bf16.msra.mxu0 0
  %1156 = vmatpush.bf16.msra.mxu0 0
  %1157 = vmatpush.bf16.msra.mxu0 0
  %1158 = vmatpush.bf16.msra.mxu0 0
  %1159 = vmatpush.bf16.msra.mxu0 %v914
  %1160 = vmatmul.bf16.gmra.mxu0 %v1066
  %v1161 = vpop.f32.mrf.mxu0
  %v1162 = vadd.f32 %v1148, %v1161
  %v1163 = vpop.f32.mrf.mxu0
  %v1164 = vadd.f32 %v1150, %v1163
  %1165 = vdwg.mxu0
  %1166 = vmatpush.bf16.msra.mxu0 %v792
  %1167 = vmatpush.bf16.msra.mxu0 %v789
  %1168 = vmatpush.bf16.msra.mxu0 %v786
  %1169 = vmatpush.bf16.msra.mxu0 %v783
  %1170 = vmatpush.bf16.msra.mxu0 %v780
  %1171 = vmatpush.bf16.msra.mxu0 %v777
  %1172 = vmatpush.bf16.msra.mxu0 %v774
  %1173 = vmatpush.bf16.msra.mxu0 %v771
  %1174 = vmatmul.bf16.gmra.mxu0 %v267
  %v1175 = vpop.f32.mrf.mxu0
  %v1176 = vadd.f32 %v240, %v1175
  %v1177 = vpop.f32.mrf.mxu0
  %v1178 = vadd.f32 %v240, %v1177
  %1179 = vdwg.mxu0
  %1180 = vmatpush.bf16.msra.mxu0 %v816
  %1181 = vmatpush.bf16.msra.mxu0 %v813
  %1182 = vmatpush.bf16.msra.mxu0 %v810
  %1183 = vmatpush.bf16.msra.mxu0 %v807
  %1184 = vmatpush.bf16.msra.mxu0 %v804
  %1185 = vmatpush.bf16.msra.mxu0 %v801
  %1186 = vmatpush.bf16.msra.mxu0 %v798
  %1187 = vmatpush.bf16.msra.mxu0 %v795
  %1188 = vmatmul.bf16.gmra.mxu0 %v268
  %v1189 = vpop.f32.mrf.mxu0
  %v1190 = vadd.f32 %v1176, %v1189
  %v1191 = vpop.f32.mrf.mxu0
  %v1192 = vadd.f32 %v1178, %v1191
  %1193 = vdwg.mxu0
  %1194 = vmatpush.bf16.msra.mxu0 %v840
  %1195 = vmatpush.bf16.msra.mxu0 %v837
  %1196 = vmatpush.bf16.msra.mxu0 %v834
  %1197 = vmatpush.bf16.msra.mxu0 %v831
  %1198 = vmatpush.bf16.msra.mxu0 %v828
  %1199 = vmatpush.bf16.msra.mxu0 %v825
  %1200 = vmatpush.bf16.msra.mxu0 %v822
  %1201 = vmatpush.bf16.msra.mxu0 %v819
  %1202 = vmatmul.bf16.gmra.mxu0 %v269
  %v1203 = vpop.f32.mrf.mxu0
  %v1204 = vadd.f32 %v1190, %v1203
  %v1205 = vpop.f32.mrf.mxu0
  %v1206 = vadd.f32 %v1192, %v1205
  %1207 = vdwg.mxu0
  %1208 = vmatpush.bf16.msra.mxu0 %v864
  %1209 = vmatpush.bf16.msra.mxu0 %v861
  %1210 = vmatpush.bf16.msra.mxu0 %v858
  %1211 = vmatpush.bf16.msra.mxu0 %v855
  %1212 = vmatpush.bf16.msra.mxu0 %v852
  %1213 = vmatpush.bf16.msra.mxu0 %v849
  %1214 = vmatpush.bf16.msra.mxu0 %v846
  %1215 = vmatpush.bf16.msra.mxu0 %v843
  %1216 = vmatmul.bf16.gmra.mxu0 %v270
  %v1217 = vpop.f32.mrf.mxu0
  %v1218 = vadd.f32 %v1204, %v1217
  %v1219 = vpop.f32.mrf.mxu0
  %v1220 = vadd.f32 %v1206, %v1219
  %1221 = vdwg.mxu0
  %1222 = vmatpush.bf16.msra.mxu0 %v888
  %1223 = vmatpush.bf16.msra.mxu0 %v885
  %1224 = vmatpush.bf16.msra.mxu0 %v882
  %1225 = vmatpush.bf16.msra.mxu0 %v879
  %1226 = vmatpush.bf16.msra.mxu0 %v876
  %1227 = vmatpush.bf16.msra.mxu0 %v873
  %1228 = vmatpush.bf16.msra.mxu0 %v870
  %1229 = vmatpush.bf16.msra.mxu0 %v867
  %1230 = vmatmul.bf16.gmra.mxu0 %v271
  %v1231 = vpop.f32.mrf.mxu0
  %v1232 = vadd.f32 %v1218, %v1231
  %v1233 = vpop.f32.mrf.mxu0
  %v1234 = vadd.f32 %v1220, %v1233
  %1235 = vdwg.mxu0
  %1236 = vmatpush.bf16.msra.mxu0 %v912
  %1237 = vmatpush.bf16.msra.mxu0 %v909
  %1238 = vmatpush.bf16.msra.mxu0 %v906
  %1239 = vmatpush.bf16.msra.mxu0 %v903
  %1240 = vmatpush.bf16.msra.mxu0 %v900
  %1241 = vmatpush.bf16.msra.mxu0 %v897
  %1242 = vmatpush.bf16.msra.mxu0 %v894
  %1243 = vmatpush.bf16.msra.mxu0 %v891
  %1244 = vmatmul.bf16.gmra.mxu0 %v272
  %v1245 = vpop.f32.mrf.mxu0
  %v1246 = vadd.f32 %v1232, %v1245
  %v1247 = vpop.f32.mrf.mxu0
  %v1248 = vadd.f32 %v1234, %v1247
  %1249 = vdwg.mxu0
  %1250 = vmatpush.bf16.msra.mxu0 0
  %1251 = vmatpush.bf16.msra.mxu0 0
  %1252 = vmatpush.bf16.msra.mxu0 0
  %1253 = vmatpush.bf16.msra.mxu0 0
  %1254 = vmatpush.bf16.msra.mxu0 0
  %1255 = vmatpush.bf16.msra.mxu0 0
  %1256 = vmatpush.bf16.msra.mxu0 0
  %1257 = vmatpush.bf16.msra.mxu0 %v915
  %1258 = vmatmul.bf16.gmra.mxu0 %v1066
  %v1259 = vpop.f32.mrf.mxu0
  %v1260 = vadd.f32 %v1246, %v1259
  %v1261 = vpop.f32.mrf.mxu0
  %v1262 = vadd.f32 %v1248, %v1261
  %1263 = vdwg.mxu0
  %1264 = vmatpush.bf16.msra.mxu0 %v793
  %1265 = vmatpush.bf16.msra.mxu0 %v790
  %1266 = vmatpush.bf16.msra.mxu0 %v787
  %1267 = vmatpush.bf16.msra.mxu0 %v784
  %1268 = vmatpush.bf16.msra.mxu0 %v781
  %1269 = vmatpush.bf16.msra.mxu0 %v778
  %1270 = vmatpush.bf16.msra.mxu0 %v775
  %1271 = vmatpush.bf16.msra.mxu0 %v772
  %1272 = vmatmul.bf16.gmra.mxu0 %v267
  %v1273 = vpop.f32.mrf.mxu0
  %v1274 = vadd.f32 %v241, %v1273
  %v1275 = vpop.f32.mrf.mxu0
  %v1276 = vadd.f32 %v241, %v1275
  %1277 = vdwg.mxu0
  %1278 = vmatpush.bf16.msra.mxu0 %v817
  %1279 = vmatpush.bf16.msra.mxu0 %v814
  %1280 = vmatpush.bf16.msra.mxu0 %v811
  %1281 = vmatpush.bf16.msra.mxu0 %v808
  %1282 = vmatpush.bf16.msra.mxu0 %v805
  %1283 = vmatpush.bf16.msra.mxu0 %v802
  %1284 = vmatpush.bf16.msra.mxu0 %v799
  %1285 = vmatpush.bf16.msra.mxu0 %v796
  %1286 = vmatmul.bf16.gmra.mxu0 %v268
  %v1287 = vpop.f32.mrf.mxu0
  %v1288 = vadd.f32 %v1274, %v1287
  %v1289 = vpop.f32.mrf.mxu0
  %v1290 = vadd.f32 %v1276, %v1289
  %1291 = vdwg.mxu0
  %1292 = vmatpush.bf16.msra.mxu0 %v841
  %1293 = vmatpush.bf16.msra.mxu0 %v838
  %1294 = vmatpush.bf16.msra.mxu0 %v835
  %1295 = vmatpush.bf16.msra.mxu0 %v832
  %1296 = vmatpush.bf16.msra.mxu0 %v829
  %1297 = vmatpush.bf16.msra.mxu0 %v826
  %1298 = vmatpush.bf16.msra.mxu0 %v823
  %1299 = vmatpush.bf16.msra.mxu0 %v820
  %1300 = vmatmul.bf16.gmra.mxu0 %v269
  %v1301 = vpop.f32.mrf.mxu0
  %v1302 = vadd.f32 %v1288, %v1301
  %v1303 = vpop.f32.mrf.mxu0
  %v1304 = vadd.f32 %v1290, %v1303
  %1305 = vdwg.mxu0
  %1306 = vmatpush.bf16.msra.mxu0 %v865
  %1307 = vmatpush.bf16.msra.mxu0 %v862
  %1308 = vmatpush.bf16.msra.mxu0 %v859
  %1309 = vmatpush.bf16.msra.mxu0 %v856
  %1310 = vmatpush.bf16.msra.mxu0 %v853
  %1311 = vmatpush.bf16.msra.mxu0 %v850
  %1312 = vmatpush.bf16.msra.mxu0 %v847
  %1313 = vmatpush.bf16.msra.mxu0 %v844
  %1314 = vmatmul.bf16.gmra.mxu0 %v270
  %v1315 = vpop.f32.mrf.mxu0
  %v1316 = vadd.f32 %v1302, %v1315
  %v1317 = vpop.f32.mrf.mxu0
  %v1318 = vadd.f32 %v1304, %v1317
  %1319 = vdwg.mxu0
  %1320 = vmatpush.bf16.msra.mxu0 %v889
  %1321 = vmatpush.bf16.msra.mxu0 %v886
  %1322 = vmatpush.bf16.msra.mxu0 %v883
  %1323 = vmatpush.bf16.msra.mxu0 %v880
  %1324 = vmatpush.bf16.msra.mxu0 %v877
  %1325 = vmatpush.bf16.msra.mxu0 %v874
  %1326 = vmatpush.bf16.msra.mxu0 %v871
  %1327 = vmatpush.bf16.msra.mxu0 %v868
  %1328 = vmatmul.bf16.gmra.mxu0 %v271
  %v1329 = vpop.f32.mrf.mxu0
  %v1330 = vadd.f32 %v1316, %v1329
  %v1331 = vpop.f32.mrf.mxu0
  %v1332 = vadd.f32 %v1318, %v1331
  %1333 = vdwg.mxu0
  %1334 = vmatpush.bf16.msra.mxu0 %v913
  %1335 = vmatpush.bf16.msra.mxu0 %v910
  %1336 = vmatpush.bf16.msra.mxu0 %v907
  %1337 = vmatpush.bf16.msra.mxu0 %v904
  %1338 = vmatpush.bf16.msra.mxu0 %v901
  %1339 = vmatpush.bf16.msra.mxu0 %v898
  %1340 = vmatpush.bf16.msra.mxu0 %v895
  %1341 = vmatpush.bf16.msra.mxu0 %v892
  %1342 = vmatmul.bf16.gmra.mxu0 %v272
  %v1343 = vpop.f32.mrf.mxu0
  %v1344 = vadd.f32 %v1330, %v1343
  %v1345 = vpop.f32.mrf.mxu0
  %v1346 = vadd.f32 %v1332, %v1345
  %1347 = vdwg.mxu0
  %1348 = vmatpush.bf16.msra.mxu0 0
  %1349 = vmatpush.bf16.msra.mxu0 0
  %1350 = vmatpush.bf16.msra.mxu0 0
  %1351 = vmatpush.bf16.msra.mxu0 0
  %1352 = vmatpush.bf16.msra.mxu0 0
  %1353 = vmatpush.bf16.msra.mxu0 0
  %1354 = vmatpush.bf16.msra.mxu0 0
  %1355 = vmatpush.bf16.msra.mxu0 %v916
  %1356 = vmatmul.bf16.gmra.mxu0 %v1066
  %v1357 = vpop.f32.mrf.mxu0
  %v1358 = vadd.f32 %v1344, %v1357
  %v1359 = vpop.f32.mrf.mxu0
  %v1360 = vadd.f32 %v1346, %v1359
  %1361 = vdwg.mxu0
  %v1362 = vmax.f32 %v1162, 0.0
  %v1363 = vmax.f32 %v1260, 0.0
  %v1364 = vmax.f32 %v1358, 0.0
  %v1365 = vmax.f32 %v1164, 0.0
  %v1366 = vmax.f32 %v1262, 0.0
  %v1367 = vmax.f32 %v1360, 0.0
  %v1368 = vpack.c.bf16 %v1365, %v1362
  %v1369 = vpack.c.bf16 %v1366, %v1363
  %v1370 = vpack.c.bf16 %v1367, %v1364
  %v1371 = vld [vmem:[%s3] sm:$0xff]
  %v1372 = vld [vmem:[%s3 + $0x8] sm:$0xff]
  %v1373 = vld [vmem:[%s3 + $0x10] sm:$0xff]
  %v1374 = vld [vmem:[%s3 + $0x18] sm:$0xff]
  %v1375 = vld [vmem:[%s3 + $0x20] sm:$0xff]
  %v1376 = vld [vmem:[%s3 + $0x28] sm:$0xff]
  %v1377 = vld [vmem:[%s3 + $0x30] sm:$0xff]
  %v1378 = vld [vmem:[%s3 + $0x38] sm:$0xff]
  %v1379 = vld [vmem:[%s3 + $0x40] sm:$0xff]
  %v1380 = vld [vmem:[%s3 + $0x48] sm:$0xff]
  %v1381 = vld [vmem:[%s3 + $0x50] sm:$0xff]
  %v1382 = vld [vmem:[%s3 + $0x58] sm:$0xff]
  %v1383 = vld [vmem:[%s3 + $0x60] sm:$0xff]
  %v1384 = vld [vmem:[%s3 + $0x68] sm:$0xff]
  %v1385 = vld [vmem:[%s3 + $0x70] sm:$0xff]
  %v1386 = vld [vmem:[%s3 + $0x78] sm:$0xff]
  %v1387 = vld [vmem:[%s3 + $0x80] sm:$0xff]
  %v1388 = vld [vmem:[%s3 + $0x88] sm:$0xff]
  %v1389 = vld [vmem:[%s3 + $0x90] sm:$0xff]
  %v1390 = vld [vmem:[%s3 + $0x98] sm:$0xff]
  %v1391 = vld [vmem:[%s3 + $0xa0] sm:$0xff]
  %v1392 = vld [vmem:[%s3 + $0xa8] sm:$0xff]
  %v1393 = vld [vmem:[%s3 + $0xb0] sm:$0xff]
  %v1394 = vld [vmem:[%s3 + $0xb8] sm:$0xff]
  %v1395 = vld [vmem:[%s3 + $0xc0] sm:$0xff]
  %v1396 = vld [vmem:[%s3 + $0xc8] sm:$0xff]
  %v1397 = vld [vmem:[%s3 + $0xd0] sm:$0xff]
  %v1398 = vld [vmem:[%s3 + $0xd8] sm:$0xff]
  %v1399 = vld [vmem:[%s3 + $0xe0] sm:$0xff]
  %v1400 = vld [vmem:[%s3 + $0xe8] sm:$0xff]
  %v1401 = vld [vmem:[%s3 + $0xf0] sm:$0xff]
  %v1402 = vld [vmem:[%s3 + $0xf8] sm:$0xff]
  %v1403 = vld [vmem:[%s3 + $0x100] sm:$0xff]
  %v1404 = vld [vmem:[%s3 + $0x108] sm:$0xff]
  %v1405 = vld [vmem:[%s3 + $0x110] sm:$0xff]
  %v1406 = vld [vmem:[%s3 + $0x118] sm:$0xff]
  %v1407 = vld [vmem:[%s3 + $0x120] sm:$0xff]
  %v1408 = vld [vmem:[%s3 + $0x128] sm:$0xff]
  %v1409 = vld [vmem:[%s3 + $0x130] sm:$0xff]
  %v1410 = vld [vmem:[%s3 + $0x138] sm:$0xff]
  %v1411 = vld [vmem:[%s3 + $0x140] sm:$0xff]
  %v1412 = vld [vmem:[%s3 + $0x148] sm:$0xff]
  %v1413 = vld [vmem:[%s3 + $0x150] sm:$0xff]
  %v1414 = vld [vmem:[%s3 + $0x158] sm:$0xff]
  %v1415 = vld [vmem:[%s3 + $0x160] sm:$0xff]
  %v1416 = vld [vmem:[%s3 + $0x168] sm:$0xff]
  %v1417 = vld [vmem:[%s3 + $0x170] sm:$0xff]
  %v1418 = vld [vmem:[%s3 + $0x178] sm:$0xff]
  %v1419 = vld [vmem:[%s4] sm:$0x3]
  %v1421 = vperm.slane %v1419, 0
  %v1422 = vperm.slane %v1419, 1
  %v1473 = vunpack.c.l.b16 %v1371
  %v1474 = vunpack.c.h.b16 %v1371
  %v1475 = vunpack.c.l.b16 %v1372
  %v1476 = vunpack.c.h.b16 %v1372
  %v1477 = vunpack.c.l.b16 %v1373
  %v1478 = vunpack.c.h.b16 %v1373
  %v1479 = vunpack.c.l.b16 %v1374
  %v1480 = vunpack.c.h.b16 %v1374
  %v1481 = vunpack.c.l.b16 %v1375
  %v1482 = vunpack.c.h.b16 %v1375
  %v1483 = vunpack.c.l.b16 %v1376
  %v1484 = vunpack.c.h.b16 %v1376
  %v1485 = vunpack.c.l.b16 %v1377
  %v1486 = vunpack.c.h.b16 %v1377
  %v1487 = vunpack.c.l.b16 %v1378
  %v1488 = vunpack.c.h.b16 %v1378
  %v1489 = vunpack.c.l.b16 %v1379
  %v1490 = vunpack.c.h.b16 %v1379
  %v1491 = vunpack.c.l.b16 %v1380
  %v1492 = vunpack.c.h.b16 %v1380
  %v1493 = vunpack.c.l.b16 %v1381
  %v1494 = vunpack.c.h.b16 %v1381
  %v1495 = vunpack.c.l.b16 %v1382
  %v1496 = vunpack.c.h.b16 %v1382
  %v1497 = vunpack.c.l.b16 %v1383
  %v1498 = vunpack.c.h.b16 %v1383
  %v1499 = vunpack.c.l.b16 %v1384
  %v1500 = vunpack.c.h.b16 %v1384
  %v1501 = vunpack.c.l.b16 %v1385
  %v1502 = vunpack.c.h.b16 %v1385
  %v1503 = vunpack.c.l.b16 %v1386
  %v1504 = vunpack.c.h.b16 %v1386
  %v1505 = vunpack.c.l.b16 %v1387
  %v1506 = vunpack.c.h.b16 %v1387
  %v1507 = vunpack.c.l.b16 %v1388
  %v1508 = vunpack.c.h.b16 %v1388
  %v1509 = vunpack.c.l.b16 %v1389
  %v1510 = vunpack.c.h.b16 %v1389
  %v1511 = vunpack.c.l.b16 %v1390
  %v1512 = vunpack.c.h.b16 %v1390
  %v1513 = vunpack.c.l.b16 %v1391
  %v1514 = vunpack.c.h.b16 %v1391
  %v1515 = vunpack.c.l.b16 %v1392
  %v1516 = vunpack.c.h.b16 %v1392
  %v1517 = vunpack.c.l.b16 %v1393
  %v1518 = vunpack.c.h.b16 %v1393
  %v1519 = vunpack.c.l.b16 %v1394
  %v1520 = vunpack.c.h.b16 %v1394
  %v1521 = vunpack.c.l.b16 %v1395
  %v1522 = vunpack.c.h.b16 %v1395
  %v1523 = vunpack.c.l.b16 %v1396
  %v1524 = vunpack.c.h.b16 %v1396
  %v1525 = vunpack.c.l.b16 %v1397
  %v1526 = vunpack.c.h.b16 %v1397
  %v1527 = vunpack.c.l.b16 %v1398
  %v1528 = vunpack.c.h.b16 %v1398
  %v1529 = vunpack.c.l.b16 %v1399
  %v1530 = vunpack.c.h.b16 %v1399
  %v1531 = vunpack.c.l.b16 %v1400
  %v1532 = vunpack.c.h.b16 %v1400
  %v1533 = vunpack.c.l.b16 %v1401
  %v1534 = vunpack.c.h.b16 %v1401
  %v1535 = vunpack.c.l.b16 %v1402
  %v1536 = vunpack.c.h.b16 %v1402
  %v1537 = vunpack.c.l.b16 %v1403
  %v1538 = vunpack.c.h.b16 %v1403
  %v1539 = vunpack.c.l.b16 %v1404
  %v1540 = vunpack.c.h.b16 %v1404
  %v1541 = vunpack.c.l.b16 %v1405
  %v1542 = vunpack.c.h.b16 %v1405
  %v1543 = vunpack.c.l.b16 %v1406
  %v1544 = vunpack.c.h.b16 %v1406
  %v1545 = vunpack.c.l.b16 %v1407
  %v1546 = vunpack.c.h.b16 %v1407
  %v1547 = vunpack.c.l.b16 %v1408
  %v1548 = vunpack.c.h.b16 %v1408
  %v1549 = vunpack.c.l.b16 %v1409
  %v1550 = vunpack.c.h.b16 %v1409
  %v1551 = vunpack.c.l.b16 %v1410
  %v1552 = vunpack.c.h.b16 %v1410
  %v1553 = vunpack.c.l.b16 %v1411
  %v1554 = vunpack.c.h.b16 %v1411
  %v1555 = vunpack.c.l.b16 %v1412
  %v1556 = vunpack.c.h.b16 %v1412
  %v1557 = vunpack.c.l.b16 %v1413
  %v1558 = vunpack.c.h.b16 %v1413
  %v1559 = vunpack.c.l.b16 %v1414
  %v1560 = vunpack.c.h.b16 %v1414
  %v1561 = vunpack.c.l.b16 %v1415
  %v1562 = vunpack.c.h.b16 %v1415
  %v1563 = vunpack.c.l.b16 %v1416
  %v1564 = vunpack.c.h.b16 %v1416
  %v1565 = vunpack.c.l.b16 %v1417
  %v1566 = vunpack.c.h.b16 %v1417
  %v1567 = vunpack.c.l.b16 %v1418
  %v1568 = vunpack.c.h.b16 %v1418
  %v1569 = vpack.c.b16 %v1475, %v1473
  %v1570 = vpack.c.b16 %v1476, %v1474
  %v1571 = vpack.c.b16 %v1479, %v1477
  %v1572 = vpack.c.b16 %v1480, %v1478
  %v1573 = vpack.c.b16 %v1483, %v1481
  %v1574 = vpack.c.b16 %v1484, %v1482
  %v1575 = vpack.c.b16 %v1487, %v1485
  %v1576 = vpack.c.b16 %v1488, %v1486
  %v1577 = vpack.c.b16 %v1491, %v1489
  %v1578 = vpack.c.b16 %v1492, %v1490
  %v1579 = vpack.c.b16 %v1495, %v1493
  %v1580 = vpack.c.b16 %v1496, %v1494
  %v1581 = vpack.c.b16 %v1499, %v1497
  %v1582 = vpack.c.b16 %v1500, %v1498
  %v1583 = vpack.c.b16 %v1503, %v1501
  %v1584 = vpack.c.b16 %v1504, %v1502
  %v1585 = vpack.c.b16 %v1507, %v1505
  %v1586 = vpack.c.b16 %v1508, %v1506
  %v1587 = vpack.c.b16 %v1511, %v1509
  %v1588 = vpack.c.b16 %v1512, %v1510
  %v1589 = vpack.c.b16 %v1515, %v1513
  %v1590 = vpack.c.b16 %v1516, %v1514
  %v1591 = vpack.c.b16 %v1519, %v1517
  %v1592 = vpack.c.b16 %v1520, %v1518
  %v1593 = vpack.c.b16 %v1523, %v1521
  %v1594 = vpack.c.b16 %v1524, %v1522
  %v1595 = vpack.c.b16 %v1527, %v1525
  %v1596 = vpack.c.b16 %v1528, %v1526
  %v1597 = vpack.c.b16 %v1531, %v1529
  %v1598 = vpack.c.b16 %v1532, %v1530
  %v1599 = vpack.c.b16 %v1535, %v1533
  %v1600 = vpack.c.b16 %v1536, %v1534
  %v1601 = vpack.c.b16 %v1539, %v1537
  %v1602 = vpack.c.b16 %v1540, %v1538
  %v1603 = vpack.c.b16 %v1543, %v1541
  %v1604 = vpack.c.b16 %v1544, %v1542
  %v1605 = vpack.c.b16 %v1547, %v1545
  %v1606 = vpack.c.b16 %v1548, %v1546
  %v1607 = vpack.c.b16 %v1551, %v1549
  %v1608 = vpack.c.b16 %v1552, %v1550
  %v1609 = vpack.c.b16 %v1555, %v1553
  %v1610 = vpack.c.b16 %v1556, %v1554
  %v1611 = vpack.c.b16 %v1559, %v1557
  %v1612 = vpack.c.b16 %v1560, %v1558
  %v1613 = vpack.c.b16 %v1563, %v1561
  %v1614 = vpack.c.b16 %v1564, %v1562
  %v1615 = vpack.c.b16 %v1567, %v1565
  %v1616 = vpack.c.b16 %v1568, %v1566
  %1665 = vmatpush.bf16.msra.mxu0 %v1583
  %1666 = vmatpush.bf16.msra.mxu0 %v1581
  %1667 = vmatpush.bf16.msra.mxu0 %v1579
  %1668 = vmatpush.bf16.msra.mxu0 %v1577
  %1669 = vmatpush.bf16.msra.mxu0 %v1575
  %1670 = vmatpush.bf16.msra.mxu0 %v1573
  %1671 = vmatpush.bf16.msra.mxu0 %v1571
  %1672 = vmatpush.bf16.msra.mxu0 %v1569
  %1673 = vmatmul.bf16.gmra.mxu0 %v1368
  %v1674 = vpop.f32.mrf.mxu0
  %v1675 = vadd.f32 %v1421, %v1674
  %v1676 = vpop.f32.mrf.mxu0
  %v1677 = vadd.f32 %v1421, %v1676
  %1678 = vdwg.mxu0
  %1679 = vmatpush.bf16.msra.mxu0 %v1599
  %1680 = vmatpush.bf16.msra.mxu0 %v1597
  %1681 = vmatpush.bf16.msra.mxu0 %v1595
  %1682 = vmatpush.bf16.msra.mxu0 %v1593
  %1683 = vmatpush.bf16.msra.mxu0 %v1591
  %1684 = vmatpush.bf16.msra.mxu0 %v1589
  %1685 = vmatpush.bf16.msra.mxu0 %v1587
  %1686 = vmatpush.bf16.msra.mxu0 %v1585
  %1687 = vmatmul.bf16.gmra.mxu0 %v1369
  %v1688 = vpop.f32.mrf.mxu0
  %v1689 = vadd.f32 %v1675, %v1688
  %v1690 = vpop.f32.mrf.mxu0
  %v1691 = vadd.f32 %v1677, %v1690
  %1692 = vdwg.mxu0
  %1693 = vmatpush.bf16.msra.mxu0 %v1615
  %1694 = vmatpush.bf16.msra.mxu0 %v1613
  %1695 = vmatpush.bf16.msra.mxu0 %v1611
  %1696 = vmatpush.bf16.msra.mxu0 %v1609
  %1697 = vmatpush.bf16.msra.mxu0 %v1607
  %1698 = vmatpush.bf16.msra.mxu0 %v1605
  %1699 = vmatpush.bf16.msra.mxu0 %v1603
  %1700 = vmatpush.bf16.msra.mxu0 %v1601
  %1701 = vmatmul.bf16.gmra.mxu0 %v1370
  %v1702 = vpop.f32.mrf.mxu0
  %v1703 = vadd.f32 %v1689, %v1702
  %v1704 = vpop.f32.mrf.mxu0
  %v1705 = vadd.f32 %v1691, %v1704
  %1706 = vdwg.mxu0
  %1707 = vmatpush.bf16.msra.mxu0 %v1584
  %1708 = vmatpush.bf16.msra.mxu0 %v1582
  %1709 = vmatpush.bf16.msra.mxu0 %v1580
  %1710 = vmatpush.bf16.msra.mxu0 %v1578
  %1711 = vmatpush.bf16.msra.mxu0 %v1576
  %1712 = vmatpush.bf16.msra.mxu0 %v1574
  %1713 = vmatpush.bf16.msra.mxu0 %v1572
  %1714 = vmatpush.bf16.msra.mxu0 %v1570
  %1715 = vmatmul.bf16.gmra.mxu0 %v1368
  %v1716 = vpop.f32.mrf.mxu0
  %v1717 = vadd.f32 %v1422, %v1716
  %v1718 = vpop.f32.mrf.mxu0
  %v1719 = vadd.f32 %v1422, %v1718
  %1720 = vdwg.mxu0
  %1721 = vmatpush.bf16.msra.mxu0 %v1600
  %1722 = vmatpush.bf16.msra.mxu0 %v1598
  %1723 = vmatpush.bf16.msra.mxu0 %v1596
  %1724 = vmatpush.bf16.msra.mxu0 %v1594
  %1725 = vmatpush.bf16.msra.mxu0 %v1592
  %1726 = vmatpush.bf16.msra.mxu0 %v1590
  %1727 = vmatpush.bf16.msra.mxu0 %v1588
  %1728 = vmatpush.bf16.msra.mxu0 %v1586
  %1729 = vmatmul.bf16.gmra.mxu0 %v1369
  %v1730 = vpop.f32.mrf.mxu0
  %v1731 = vadd.f32 %v1717, %v1730
  %v1732 = vpop.f32.mrf.mxu0
  %v1733 = vadd.f32 %v1719, %v1732
  %1734 = vdwg.mxu0
  %1735 = vmatpush.bf16.msra.mxu0 %v1616
  %1736 = vmatpush.bf16.msra.mxu0 %v1614
  %1737 = vmatpush.bf16.msra.mxu0 %v1612
  %1738 = vmatpush.bf16.msra.mxu0 %v1610
  %1739 = vmatpush.bf16.msra.mxu0 %v1608
  %1740 = vmatpush.bf16.msra.mxu0 %v1606
  %1741 = vmatpush.bf16.msra.mxu0 %v1604
  %1742 = vmatpush.bf16.msra.mxu0 %v1602
  %1743 = vmatmul.bf16.gmra.mxu0 %v1370
  %v1744 = vpop.f32.mrf.mxu0
  %v1745 = vadd.f32 %v1731, %v1744
  %v1746 = vpop.f32.mrf.mxu0
  %v1747 = vadd.f32 %v1733, %v1746
  %1748 = vdwg.mxu0
  %v1749 = vmax.f32 %v1703, 0.0
  %v1750 = vmax.f32 %v1745, 0.0
  %v1751 = vmax.f32 %v1705, 0.0
  %v1752 = vmax.f32 %v1747, 0.0
  %v1753 = vpack.c.bf16 %v1751, %v1749
  %v1754 = vpack.c.bf16 %v1752, %v1750
  %v1755 = vld [vmem:[%s5] sm:$0xf]
  %v1756 = vld [vmem:[%s5 + $0x4] sm:$0xf]
  %v1757 = vld [vmem:[%s5 + $0x8] sm:$0xf]
  %v1758 = vld [vmem:[%s5 + $0xc] sm:$0xf]
  %v1759 = vld [vmem:[%s5 + $0x10] sm:$0xf]
  %v1760 = vld [vmem:[%s5 + $0x14] sm:$0xf]
  %v1761 = vld [vmem:[%s5 + $0x18] sm:$0xf]
  %v1762 = vld [vmem:[%s5 + $0x1c] sm:$0xf]
  %v1763 = vld [vmem:[%s5 + $0x20] sm:$0xf]
  %v1764 = vld [vmem:[%s5 + $0x24] sm:$0xf]
  %v1765 = vld [vmem:[%s5 + $0x28] sm:$0xf]
  %v1766 = vld [vmem:[%s5 + $0x2c] sm:$0xf]
  %v1767 = vld [vmem:[%s5 + $0x30] sm:$0xf]
  %v1768 = vld [vmem:[%s5 + $0x34] sm:$0xf]
  %v1769 = vld [vmem:[%s5 + $0x38] sm:$0xf]
  %v1770 = vld [vmem:[%s5 + $0x3c] sm:$0xf]
  %v1771 = vld [vmem:[%s5 + $0x40] sm:$0xf]
  %v1772 = vld [vmem:[%s5 + $0x44] sm:$0xf]
  %v1773 = vld [vmem:[%s5 + $0x48] sm:$0xf]
  %v1774 = vld [vmem:[%s5 + $0x4c] sm:$0xf]
  %v1775 = vld [vmem:[%s5 + $0x50] sm:$0xf]
  %v1776 = vld [vmem:[%s5 + $0x54] sm:$0xf]
  %v1777 = vld [vmem:[%s5 + $0x58] sm:$0xf]
  %v1778 = vld [vmem:[%s5 + $0x5c] sm:$0xf]
  %v1779 = vld [vmem:[%s5 + $0x60] sm:$0xf]
  %v1780 = vld [vmem:[%s5 + $0x64] sm:$0xf]
  %v1781 = vld [vmem:[%s5 + $0x68] sm:$0xf]
  %v1782 = vld [vmem:[%s5 + $0x6c] sm:$0xf]
  %v1783 = vld [vmem:[%s5 + $0x70] sm:$0xf]
  %v1784 = vld [vmem:[%s5 + $0x74] sm:$0xf]
  %v1785 = vld [vmem:[%s5 + $0x78] sm:$0xf]
  %v1786 = vld [vmem:[%s5 + $0x7c] sm:$0xf]
  %v1787 = vld [vmem:[%s6] sm:$0x1]
  %v1789 = vperm.slane %v1787, 0
  %v1823 = vunpack.c.l.b16 %v1755
  %v1824 = vunpack.c.l.b16 %v1756
  %v1825 = vunpack.c.l.b16 %v1757
  %v1826 = vunpack.c.l.b16 %v1758
  %v1827 = vunpack.c.l.b16 %v1759
  %v1828 = vunpack.c.l.b16 %v1760
  %v1829 = vunpack.c.l.b16 %v1761
  %v1830 = vunpack.c.l.b16 %v1762
  %v1831 = vunpack.c.l.b16 %v1763
  %v1832 = vunpack.c.l.b16 %v1764
  %v1833 = vunpack.c.l.b16 %v1765
  %v1834 = vunpack.c.l.b16 %v1766
  %v1835 = vunpack.c.l.b16 %v1767
  %v1836 = vunpack.c.l.b16 %v1768
  %v1837 = vunpack.c.l.b16 %v1769
  %v1838 = vunpack.c.l.b16 %v1770
  %v1839 = vunpack.c.l.b16 %v1771
  %v1840 = vunpack.c.l.b16 %v1772
  %v1841 = vunpack.c.l.b16 %v1773
  %v1842 = vunpack.c.l.b16 %v1774
  %v1843 = vunpack.c.l.b16 %v1775
  %v1844 = vunpack.c.l.b16 %v1776
  %v1845 = vunpack.c.l.b16 %v1777
  %v1846 = vunpack.c.l.b16 %v1778
  %v1847 = vunpack.c.l.b16 %v1779
  %v1848 = vunpack.c.l.b16 %v1780
  %v1849 = vunpack.c.l.b16 %v1781
  %v1850 = vunpack.c.l.b16 %v1782
  %v1851 = vunpack.c.l.b16 %v1783
  %v1852 = vunpack.c.l.b16 %v1784
  %v1853 = vunpack.c.l.b16 %v1785
  %v1854 = vunpack.c.l.b16 %v1786
  %v1855 = vpack.c.b16 %v1824, %v1823
  %v1856 = vpack.c.b16 %v1826, %v1825
  %v1857 = vpack.c.b16 %v1828, %v1827
  %v1858 = vpack.c.b16 %v1830, %v1829
  %v1859 = vpack.c.b16 %v1832, %v1831
  %v1860 = vpack.c.b16 %v1834, %v1833
  %v1861 = vpack.c.b16 %v1836, %v1835
  %v1862 = vpack.c.b16 %v1838, %v1837
  %v1863 = vpack.c.b16 %v1840, %v1839
  %v1864 = vpack.c.b16 %v1842, %v1841
  %v1865 = vpack.c.b16 %v1844, %v1843
  %v1866 = vpack.c.b16 %v1846, %v1845
  %v1867 = vpack.c.b16 %v1848, %v1847
  %v1868 = vpack.c.b16 %v1850, %v1849
  %v1869 = vpack.c.b16 %v1852, %v1851
  %v1870 = vpack.c.b16 %v1854, %v1853
  %1887 = vmatpush.bf16.msra.mxu0 %v1862
  %1888 = vmatpush.bf16.msra.mxu0 %v1861
  %1889 = vmatpush.bf16.msra.mxu0 %v1860
  %1890 = vmatpush.bf16.msra.mxu0 %v1859
  %1891 = vmatpush.bf16.msra.mxu0 %v1858
  %1892 = vmatpush.bf16.msra.mxu0 %v1857
  %1893 = vmatpush.bf16.msra.mxu0 %v1856
  %1894 = vmatpush.bf16.msra.mxu0 %v1855
  %1895 = vmatmul.bf16.gmra.mxu0 %v1753
  %v1896 = vpop.f32.mrf.mxu0
  %v1897 = vadd.f32 %v1789, %v1896
  %v1898 = vpop.f32.mrf.mxu0
  %v1899 = vadd.f32 %v1789, %v1898
  %1900 = vdwg.mxu0
  %1901 = vmatpush.bf16.msra.mxu0 %v1870
  %1902 = vmatpush.bf16.msra.mxu0 %v1869
  %1903 = vmatpush.bf16.msra.mxu0 %v1868
  %1904 = vmatpush.bf16.msra.mxu0 %v1867
  %1905 = vmatpush.bf16.msra.mxu0 %v1866
  %1906 = vmatpush.bf16.msra.mxu0 %v1865
  %1907 = vmatpush.bf16.msra.mxu0 %v1864
  %1908 = vmatpush.bf16.msra.mxu0 %v1863
  %1909 = vmatmul.bf16.gmra.mxu0 %v1754
  %v1910 = vpop.f32.mrf.mxu0
  %v1911 = vadd.f32 %v1897, %v1910
  %v1912 = vpop.f32.mrf.mxu0
  %v1913 = vadd.f32 %v1899, %v1912
  %1914 = vdwg.mxu0
  %v1915 = vmax.f32 %v1911, 0.0
  %v1916 = vmax.f32 %v1913, 0.0
  %v1917 = vpack.c.bf16 %v1916, %v1915
  %v1918 = vld [vmem:[%s7] sm:$0xf]
  %v1919 = vld [vmem:[%s7 + $0x4] sm:$0xf]
  %v1920 = vld [vmem:[%s7 + $0x8] sm:$0xf]
  %v1921 = vld [vmem:[%s7 + $0xc] sm:$0xf]
  %v1922 = vld [vmem:[%s7 + $0x10] sm:$0xf]
  %v1923 = vld [vmem:[%s7 + $0x14] sm:$0xf]
  %v1924 = vld [vmem:[%s7 + $0x18] sm:$0xf]
  %v1925 = vld [vmem:[%s7 + $0x1c] sm:$0xf]
  %v1926 = vld [vmem:[%s7 + $0x20] sm:$0xf]
  %v1927 = vld [vmem:[%s7 + $0x24] sm:$0xf]
  %v1928 = vld [vmem:[%s7 + $0x28] sm:$0xf]
  %v1929 = vld [vmem:[%s7 + $0x2c] sm:$0xf]
  %v1930 = vld [vmem:[%s7 + $0x30] sm:$0xf]
  %v1931 = vld [vmem:[%s7 + $0x34] sm:$0xf]
  %v1932 = vld [vmem:[%s7 + $0x38] sm:$0xf]
  %v1933 = vld [vmem:[%s7 + $0x3c] sm:$0xf]
  %v1934 = vld [vmem:[%s8] sm:$0x1]
  %v1936 = vperm.slane %v1934, 0
  %v1954 = vunpack.c.l.b16 %v1918
  %v1955 = vunpack.c.l.b16 %v1919
  %v1956 = vunpack.c.l.b16 %v1920
  %v1957 = vunpack.c.l.b16 %v1921
  %v1958 = vunpack.c.l.b16 %v1922
  %v1959 = vunpack.c.l.b16 %v1923
  %v1960 = vunpack.c.l.b16 %v1924
  %v1961 = vunpack.c.l.b16 %v1925
  %v1962 = vunpack.c.l.b16 %v1926
  %v1963 = vunpack.c.l.b16 %v1927
  %v1964 = vunpack.c.l.b16 %v1928
  %v1965 = vunpack.c.l.b16 %v1929
  %v1966 = vunpack.c.l.b16 %v1930
  %v1967 = vunpack.c.l.b16 %v1931
  %v1968 = vunpack.c.l.b16 %v1932
  %v1969 = vunpack.c.l.b16 %v1933
  %v1970 = vpack.c.b16 %v1955, %v1954
  %v1971 = vpack.c.b16 %v1957, %v1956
  %v1972 = vpack.c.b16 %v1959, %v1958
  %v1973 = vpack.c.b16 %v1961, %v1960
  %v1974 = vpack.c.b16 %v1963, %v1962
  %v1975 = vpack.c.b16 %v1965, %v1964
  %v1976 = vpack.c.b16 %v1967, %v1966
  %v1977 = vpack.c.b16 %v1969, %v1968
  %1986 = vmatpush.bf16.msra.mxu0 %v1977
  %1987 = vmatpush.bf16.msra.mxu0 %v1976
  %1988 = vmatpush.bf16.msra.mxu0 %v1975
  %1989 = vmatpush.bf16.msra.mxu0 %v1974
  %1990 = vmatpush.bf16.msra.mxu0 %v1973
  %1991 = vmatpush.bf16.msra.mxu0 %v1972
  %1992 = vmatpush.bf16.msra.mxu0 %v1971
  %1993 = vmatpush.bf16.msra.mxu0 %v1970
  %1994 = vmatmul.bf16.gmra.mxu0 %v1917
  %v1995 = vpop.f32.mrf.mxu0
  %v1996 = vadd.f32 %v1936, %v1995
  %v1997 = vpop.f32.mrf.mxu0
  %v1998 = vadd.f32 %v1936, %v1997
  %1999 = vdwg.mxu0
  %2000 = vmax.xlane.f32.xlu0 %v1996
  %v2001 = vpop.xlane.xlu0 %2000
  %2002 = vmax.xlane.f32.xlu0 %v1998
  %v2003 = vpop.xlane.xlu0 %2002
  %v2004 = vsub.f32 %v1996, %v2001
  %v2005 = vsub.f32 %v1998, %v2003
  %v2006 = vmul.f32 %v2004, 1.442695
  %v2007 = vpow.pop %v2006
  %v2008 = vmul.f32 %v2005, 1.442695
  %v2009 = vpow.pop %v2008
  %2010 = vadd.xlane.f32.xlu0 %v2007
  %v2011 = vpop.xlane.xlu0 %2010
  %2012 = vadd.xlane.f32.xlu0 %v2009
  %v2013 = vpop.xlane.xlu0 %2012
  %v2014 = vlog2.pop %v2011
  %v2015 = vmul.f32 %v2014, 0.6931472
  %v2016 = vlog2.pop %v2013
  %v2017 = vmul.f32 %v2016, 0.6931472
  %v2018 = vsub.f32 %v2004, %v2015
  %v2019 = vsub.f32 %v2005, %v2017
  %2020 = vst [vmem:[%s9] sm:$0xff] %v2018
  %2021 = vst [vmem:[%s9 + $0x8] sm:$0xff] %v2019
  // Predicated region
  $region38: #{neuro_network_forward.1} parent=0 // pred_check
    _
  $region39: #{neuro_network_forward.1} parent=0 // pred_check_branch
    %2023 = sbr.rel (0) target = $region41
  $region40: #{neuro_network_forward.1} parent=0 // pred_region
    _
  $region41: #{neuro_network_forward.1} parent=0 // pred_fallthru
    _
  // Predicated region
  $region42: #{neuro_network_forward.1} parent=0 // pred_check
    _
  $region43: #{neuro_network_forward.1} parent=0 // pred_check_branch
    %2025 = sbr.rel (0) target = $region45
  $region44: #{neuro_network_forward.1} parent=0 // pred_region
    _
  $region45: #{neuro_network_forward.1} parent=0 // pred_fallthru
    _

</llo_original>
